<compile_context>
chip_gen: v5e
topology: v5e:2x2
jax: 0.10.0
libtpu: 0.0.40
codegen_flags: <defaults>
</compile_context>

<pallas_src>
import functools
import math

import jax
import jax.numpy as jnp
import numpy as np
from jax.experimental import pallas as pl
from jax.experimental.pallas import tpu as pltpu


def _prep_params(w_in, b_in, w_out, b_out, *, num_heads, compute_dtype):
    """Host-side (init-time) parameter prep.

    Returns:
      w_qkv_t : (E, 3E) compute_dtype   columns = [Wq^T * scale | Wk^T | Wv^T]
      b_qkv   : (1, 3E) float32         [bq * scale | bk | bv]
      wo_t    : (E, E)  compute_dtype   out_proj.weight^T
      bo      : (1, E)  float32
    """
    three_e, embed_dim = w_in.shape
    assert three_e == 3 * embed_dim
    head_dim = embed_dim // num_heads
    scale = 1.0 / math.sqrt(head_dim)

    w_q, w_k, w_v = jnp.split(w_in, 3, axis=0)                     # each (E, E)
    w_qkv_t = jnp.concatenate(
        [jnp.transpose(w_q) * scale, jnp.transpose(w_k), jnp.transpose(w_v)],
        axis=1).astype(compute_dtype)                              # (E, 3E)

    b_q, b_k, b_v = jnp.split(b_in, 3)
    b_qkv = jnp.concatenate([b_q * scale, b_k, b_v]).reshape(1, 3 * embed_dim)
    b_qkv = b_qkv.astype(jnp.float32)

    wo_t = jnp.transpose(w_out).astype(compute_dtype)              # (E, E)
    bo = b_out.reshape(1, embed_dim).astype(jnp.float32)
    return w_qkv_t, b_qkv, wo_t, bo


def _mha_kernel(x_ref, wqkv_ref, bqkv_ref, wo_ref, bo_ref, o_ref, ctx_ref, *,
                num_heads, head_dim, compute_dtype):
    """One batch row: fused QKV -> per-head attention -> single output projection."""
    embed_dim = num_heads * head_dim
    f32 = jnp.float32
    exact = jnp.dtype(compute_dtype) == jnp.dtype(jnp.float32)

    x = x_ref[0]                                                        # (S, E) compute_dtype

    # Fused QKV projection: one (S, E) x (E, 3E) MXU matmul, f32 accumulation + f32 bias.
    qkv = jnp.dot(x, wqkv_ref[...], preferred_element_type=f32) + bqkv_ref[...]  # (S, 3E) f32

    # Static unroll over heads -> static lane slices only.
    for h in range(num_heads):
        lo = h * head_dim
        q = qkv[:, lo:lo + head_dim].astype(compute_dtype)              # (S, hd)
        k = qkv[:, embed_dim + lo:embed_dim + lo + head_dim].astype(compute_dtype)
        v = qkv[:, 2 * embed_dim + lo:2 * embed_dim + lo + head_dim].astype(compute_dtype)

        # Scores: contract head_dim of both operands directly (no k.T materialization).
        s = jax.lax.dot_general(q, k, (((1,), (1,)), ((), ())),
                                preferred_element_type=f32)             # (S, S) f32

        m = jnp.max(s, axis=-1, keepdims=True)
        p = jnp.exp(s - m)                                              # unnormalized probs
        denom = jnp.sum(p, axis=-1, keepdims=True)

        ctx = jnp.dot(p.astype(compute_dtype), v,
                      preferred_element_type=f32)                       # (S, hd) f32

        # Deferred softmax normalization: scale (S, hd) context, not the (S, S) tile.
        if exact:
            ctx = ctx / denom                                           # exact f32 path
        else:
            ctx = ctx * pl.reciprocal(denom, approx=True)               # EUP, off the VALU

        ctx_ref[:, lo:lo + head_dim] = ctx.astype(compute_dtype)        # head's lane slice

    # Single output projection at full contraction depth K = E, plus bias.
    out = jnp.dot(ctx_ref[...], wo_ref[...], preferred_element_type=f32) + bo_ref[...]
    o_ref[0] = out.astype(o_ref.dtype)


@functools.partial(jax.jit, static_argnames=("num_heads", "compute_dtype"))
def mha_forward(x_sbe, w_in, b_in, w_out, b_out, *, num_heads,
                compute_dtype=jnp.bfloat16):
    """x_sbe: (S, B, E) float32 (torch batch_first=False layout). Returns (S, B, E) f32."""
    S, B, E = x_sbe.shape
    assert E % num_heads == 0
    head_dim = E // num_heads

    w_qkv_t, b_qkv, wo_t, bo = _prep_params(
        w_in, b_in, w_out, b_out, num_heads=num_heads, compute_dtype=compute_dtype)

    # (B, S, E) is the natural TPU layout (E on lanes, S on sublanes).
    x_bse = jnp.transpose(x_sbe, (1, 0, 2)).astype(compute_dtype)       # (B, S, E)

    kernel = functools.partial(_mha_kernel, num_heads=num_heads, head_dim=head_dim,
                               compute_dtype=compute_dtype)

    out_bse = pl.pallas_call(
        kernel,
        out_shape=jax.ShapeDtypeStruct((B, S, E), jnp.float32),
        grid_spec=pltpu.PrefetchScalarGridSpec(
            num_scalar_prefetch=0,
            grid=(B,),
            in_specs=[
                pl.BlockSpec((1, S, E), lambda b: (b, 0, 0)),       # x (per batch row)
                pl.BlockSpec((E, 3 * E), lambda b: (0, 0)),         # fused QKV weight (resident)
                pl.BlockSpec((1, 3 * E), lambda b: (0, 0)),         # fused QKV bias   (resident)
                pl.BlockSpec((E, E), lambda b: (0, 0)),             # out_proj.weight^T (resident)
                pl.BlockSpec((1, E), lambda b: (0, 0)),             # out_proj bias     (resident)
            ],
            out_specs=pl.BlockSpec((1, S, E), lambda b: (b, 0, 0)),
            scratch_shapes=[pltpu.VMEM((S, E), compute_dtype)],     # head-concatenated ctx
        ),
        compiler_params=pltpu.CompilerParams(
            dimension_semantics=("parallel",),
            vmem_limit_bytes=64 * 1024 * 1024,
        ),
    )(x_bse, w_qkv_t, b_qkv, wo_t, bo)

    return jnp.transpose(out_bse, (1, 0, 2))                            # back to (S, B, E)


def _mha_reference(x_sbe, w_in, b_in, w_out, b_out, *, num_heads,
                   compute_dtype=jnp.float32):
    """Pure-JAX reference mirroring torch.nn.MultiheadAttention (eval, no mask).

    compute_dtype=float32  -> torch f32 semantics (up to benign reassociation).
    compute_dtype=bfloat16 -> same cast points as the kernel (matched-precision check).
    """
    S, B, E = x_sbe.shape
    head_dim = E // num_heads
    f32 = jnp.float32
    w_qkv_t, b_qkv, wo_t, bo = _prep_params(
        w_in, b_in, w_out, b_out, num_heads=num_heads, compute_dtype=compute_dtype)

    x = jnp.transpose(x_sbe, (1, 0, 2)).astype(compute_dtype)                    # (B, S, E)
    qkv = jnp.einsum("bse,ef->bsf", x, w_qkv_t,
                     preferred_element_type=f32) + b_qkv                         # (B, S, 3E) f32
    q, k, v = jnp.split(qkv, 3, axis=-1)

    def split_heads(t):                                                          # -> (B, H, S, hd)
        return jnp.transpose(t.reshape(B, S, num_heads, head_dim), (0, 2, 1, 3))

    q = split_heads(q).astype(compute_dtype)
    k = split_heads(k).astype(compute_dtype)
    v = split_heads(v).astype(compute_dtype)

    s = jnp.einsum("bhqd,bhkd->bhqk", q, k, preferred_element_type=f32)
    p = jax.nn.softmax(s, axis=-1)
    ctx = jnp.einsum("bhqk,bhkd->bhqd", p.astype(compute_dtype), v,
                     preferred_element_type=f32)
    ctx = jnp.transpose(ctx, (0, 2, 1, 3)).reshape(B, S, E).astype(compute_dtype)
    out = jnp.einsum("bse,ef->bsf", ctx, wo_t, preferred_element_type=f32) + bo  # (B, S, E)
    return jnp.transpose(out, (1, 0, 2))                                         # (S, B, E)


if __name__ == "__main__":
    # Small shapes: seq=8, batch=2, hidden=32, heads=4 (head_dim=8).
    S, B, E, H = 8, 2, 32, 4

    key = jax.random.PRNGKey(0)
    k_x, k_win, k_bin, k_wout, k_bout = jax.random.split(key, 5)

    # Shapes match nn.MultiheadAttention params:
    #   in_proj_weight (3E, E), in_proj_bias (3E,), out_proj.weight (E, E), out_proj.bias (E,)
    x = jax.random.normal(k_x, (S, B, E), dtype=jnp.float32)
    w_in = jax.random.normal(k_win, (3 * E, E), dtype=jnp.float32) * (1.0 / math.sqrt(E))
    b_in = jax.random.normal(k_bin, (3 * E,), dtype=jnp.float32) * 0.01
    w_out = jax.random.normal(k_wout, (E, E), dtype=jnp.float32) * (1.0 / math.sqrt(E))
    b_out = jax.random.normal(k_bout, (E,), dtype=jnp.float32) * 0.01

    # 1) f32 compute path: exact divide + full-precision matmuls on both sides.
    with jax.default_matmul_precision("highest"):
        out_f32 = jax.block_until_ready(
            mha_forward(x, w_in, b_in, w_out, b_out, num_heads=H,
                        compute_dtype=jnp.float32))
        ref_f32 = jax.block_until_ready(
            _mha_reference(x, w_in, b_in, w_out, b_out, num_heads=H,
                           compute_dtype=jnp.float32))
    np.testing.assert_allclose(np.asarray(out_f32), np.asarray(ref_f32),
                               rtol=2e-3, atol=2e-3)

    # 2) bf16 MXU path (deployment default on v6e/v7x): matched-precision sanity check.
    out_bf16 = jax.block_until_ready(
        mha_forward(x, w_in, b_in, w_out, b_out, num_heads=H,
                    compute_dtype=jnp.bfloat16))
    ref_bf16 = jax.block_until_ready(
        _mha_reference(x, w_in, b_in, w_out, b_out, num_heads=H,
                       compute_dtype=jnp.bfloat16))
    np.testing.assert_allclose(np.asarray(out_bf16), np.asarray(ref_bf16),
                               rtol=3e-2, atol=3e-2)

    print("KERNEL_OK")
</pallas_src>

<mosaic_0001>
module attributes {stable_mosaic.version = 11 : i64} {
  func.func @_mha_kernel(%arg0: i32, %arg1: memref<1x8x32xf32, #tpu.memory_space<vmem>>, %arg2: memref<32x96xf32, #tpu.memory_space<vmem>>, %arg3: memref<1x96xf32, #tpu.memory_space<vmem>>, %arg4: memref<32x32xf32, #tpu.memory_space<vmem>>, %arg5: memref<1x32xf32, #tpu.memory_space<vmem>>, %arg6: memref<1x8x32xf32, #tpu.memory_space<vmem>>, %arg7: memref<8x32xf32, #tpu.memory_space<vmem>>) attributes {dimension_semantics = [#tpu.dimension_semantics<parallel>], iteration_bounds = array<i64: 2>, scalar_prefetch = 0 : i64, scratch_operands = 1 : i64, tpu.core_type = #tpu.core_type<tc>, window_params = [{transform_indices = @transform_0, window_bounds = array<i64: 1, 8, 32>}, {pipeline_mode = #tpu.pipeline_mode<synchronous>, transform_indices = @transform_1, window_bounds = array<i64: 32, 96>}, {pipeline_mode = #tpu.pipeline_mode<synchronous>, transform_indices = @transform_2, window_bounds = array<i64: 1, 96>}, {pipeline_mode = #tpu.pipeline_mode<synchronous>, transform_indices = @transform_3, window_bounds = array<i64: 32, 32>}, {pipeline_mode = #tpu.pipeline_mode<synchronous>, transform_indices = @transform_4, window_bounds = array<i64: 1, 32>}, {transform_indices = @transform_5, window_bounds = array<i64: 1, 8, 32>}]} {
    %c0 = arith.constant 0 : index
    %c0_0 = arith.constant 0 : index
    %c0_1 = arith.constant 0 : index
    %0 = vector.load %arg1[%c0, %c0_0, %c0_1] : memref<1x8x32xf32, #tpu.memory_space<vmem>>, vector<1x8x32xf32>
    %1 = vector.shape_cast %0 : vector<1x8x32xf32> to vector<8x32xf32>
    %c0_2 = arith.constant 0 : index
    %c0_3 = arith.constant 0 : index
    %2 = vector.load %arg2[%c0_2, %c0_3] : memref<32x96xf32, #tpu.memory_space<vmem>>, vector<32x96xf32>
    %cst = arith.constant dense<0.000000e+00> : vector<8x96xf32>
    %3 = tpu.matmul %1, %2, %cst {dimension_numbers = #tpu.dot_dimension_numbers<[1], [0], [0], [1], [0, 0, 1, 1], [], []>, precision = #tpu.contract_precision<fp32>} : vector<8x32xf32>, vector<32x96xf32>, vector<8x96xf32> -> vector<8x96xf32>
    %c0_4 = arith.constant 0 : index
    %c0_5 = arith.constant 0 : index
    %4 = vector.load %arg3[%c0_4, %c0_5] : memref<1x96xf32, #tpu.memory_space<vmem>>, vector<1x96xf32>
    %5 = vector.broadcast %4 : vector<1x96xf32> to vector<8x96xf32>
    %6 = arith.addf %3, %5 : vector<8x96xf32>
    %7 = vector.extract_strided_slice %6 {offsets = [0, 0], sizes = [8, 8], strides = [1, 1]} : vector<8x96xf32> to vector<8x8xf32>
    %8 = vector.extract_strided_slice %6 {offsets = [0, 32], sizes = [8, 8], strides = [1, 1]} : vector<8x96xf32> to vector<8x8xf32>
    %9 = vector.extract_strided_slice %6 {offsets = [0, 64], sizes = [8, 8], strides = [1, 1]} : vector<8x96xf32> to vector<8x8xf32>
    %cst_6 = arith.constant dense<0.000000e+00> : vector<8x8xf32>
    %10 = tpu.matmul %7, %8, %cst_6 {dimension_numbers = #tpu.dot_dimension_numbers<[1], [1], [0], [0], [0, 0, 1, 0], [], []>, precision = #tpu.contract_precision<fp32>} : vector<8x8xf32>, vector<8x8xf32>, vector<8x8xf32> -> vector<8x8xf32>
    %cst_7 = arith.constant dense<0xFF800000> : vector<8xf32>
    %11 = vector.multi_reduction <maximumf>, %10, %cst_7 [1] : vector<8x8xf32> to vector<8xf32>
    %12 = vector.shape_cast %11 : vector<8xf32> to vector<8x1xf32>
    %13 = vector.broadcast %12 : vector<8x1xf32> to vector<8x8xf32>
    %14 = arith.subf %10, %13 : vector<8x8xf32>
    %15 = math.exp %14 : vector<8x8xf32>
    %cst_8 = arith.constant dense<0.000000e+00> : vector<8xf32>
    %16 = vector.multi_reduction <add>, %15, %cst_8 [1] : vector<8x8xf32> to vector<8xf32>
    %17 = vector.shape_cast %16 : vector<8xf32> to vector<8x1xf32>
    %cst_9 = arith.constant dense<0.000000e+00> : vector<8x8xf32>
    %18 = tpu.matmul %15, %9, %cst_9 {dimension_numbers = #tpu.dot_dimension_numbers<[1], [0], [0], [1], [0, 0, 1, 1], [], []>, precision = #tpu.contract_precision<fp32>} : vector<8x8xf32>, vector<8x8xf32>, vector<8x8xf32> -> vector<8x8xf32>
    %19 = vector.broadcast %17 : vector<8x1xf32> to vector<8x8xf32>
    %20 = arith.divf %18, %19 : vector<8x8xf32>
    %c0_10 = arith.constant 0 : index
    %c0_11 = arith.constant 0 : index
    %21 = vector.load %arg7[%c0_10, %c0_11] : memref<8x32xf32, #tpu.memory_space<vmem>>, vector<8x8xf32>
    tpu.vector_store %arg7[%c0_10, %c0_11], %20 {strides = array<i32>} : memref<8x32xf32, #tpu.memory_space<vmem>>, vector<8x8xf32>,
    %22 = vector.extract_strided_slice %6 {offsets = [0, 8], sizes = [8, 8], strides = [1, 1]} : vector<8x96xf32> to vector<8x8xf32>
    %23 = vector.extract_strided_slice %6 {offsets = [0, 40], sizes = [8, 8], strides = [1, 1]} : vector<8x96xf32> to vector<8x8xf32>
    %24 = vector.extract_strided_slice %6 {offsets = [0, 72], sizes = [8, 8], strides = [1, 1]} : vector<8x96xf32> to vector<8x8xf32>
    %cst_12 = arith.constant dense<0.000000e+00> : vector<8x8xf32>
    %25 = tpu.matmul %22, %23, %cst_12 {dimension_numbers = #tpu.dot_dimension_numbers<[1], [1], [0], [0], [0, 0, 1, 0], [], []>, precision = #tpu.contract_precision<fp32>} : vector<8x8xf32>, vector<8x8xf32>, vector<8x8xf32> -> vector<8x8xf32>
    %cst_13 = arith.constant dense<0xFF800000> : vector<8xf32>
    %26 = vector.multi_reduction <maximumf>, %25, %cst_13 [1] : vector<8x8xf32> to vector<8xf32>
    %27 = vector.shape_cast %26 : vector<8xf32> to vector<8x1xf32>
    %28 = vector.broadcast %27 : vector<8x1xf32> to vector<8x8xf32>
    %29 = arith.subf %25, %28 : vector<8x8xf32>
    %30 = math.exp %29 : vector<8x8xf32>
    %cst_14 = arith.constant dense<0.000000e+00> : vector<8xf32>
    %31 = vector.multi_reduction <add>, %30, %cst_14 [1] : vector<8x8xf32> to vector<8xf32>
    %32 = vector.shape_cast %31 : vector<8xf32> to vector<8x1xf32>
    %cst_15 = arith.constant dense<0.000000e+00> : vector<8x8xf32>
    %33 = tpu.matmul %30, %24, %cst_15 {dimension_numbers = #tpu.dot_dimension_numbers<[1], [0], [0], [1], [0, 0, 1, 1], [], []>, precision = #tpu.contract_precision<fp32>} : vector<8x8xf32>, vector<8x8xf32>, vector<8x8xf32> -> vector<8x8xf32>
    %34 = vector.broadcast %32 : vector<8x1xf32> to vector<8x8xf32>
    %35 = arith.divf %33, %34 : vector<8x8xf32>
    %c0_16 = arith.constant 0 : index
    %c8 = arith.constant 8 : index
    %36 = vector.load %arg7[%c0_16, %c8] : memref<8x32xf32, #tpu.memory_space<vmem>>, vector<8x8xf32>
    tpu.vector_store %arg7[%c0_16, %c8], %35 {strides = array<i32>} : memref<8x32xf32, #tpu.memory_space<vmem>>, vector<8x8xf32>,
    %37 = vector.extract_strided_slice %6 {offsets = [0, 16], sizes = [8, 8], strides = [1, 1]} : vector<8x96xf32> to vector<8x8xf32>
    %38 = vector.extract_strided_slice %6 {offsets = [0, 48], sizes = [8, 8], strides = [1, 1]} : vector<8x96xf32> to vector<8x8xf32>
    %39 = vector.extract_strided_slice %6 {offsets = [0, 80], sizes = [8, 8], strides = [1, 1]} : vector<8x96xf32> to vector<8x8xf32>
    %cst_17 = arith.constant dense<0.000000e+00> : vector<8x8xf32>
    %40 = tpu.matmul %37, %38, %cst_17 {dimension_numbers = #tpu.dot_dimension_numbers<[1], [1], [0], [0], [0, 0, 1, 0], [], []>, precision = #tpu.contract_precision<fp32>} : vector<8x8xf32>, vector<8x8xf32>, vector<8x8xf32> -> vector<8x8xf32>
    %cst_18 = arith.constant dense<0xFF800000> : vector<8xf32>
    %41 = vector.multi_reduction <maximumf>, %40, %cst_18 [1] : vector<8x8xf32> to vector<8xf32>
    %42 = vector.shape_cast %41 : vector<8xf32> to vector<8x1xf32>
    %43 = vector.broadcast %42 : vector<8x1xf32> to vector<8x8xf32>
    %44 = arith.subf %40, %43 : vector<8x8xf32>
    %45 = math.exp %44 : vector<8x8xf32>
    %cst_19 = arith.constant dense<0.000000e+00> : vector<8xf32>
    %46 = vector.multi_reduction <add>, %45, %cst_19 [1] : vector<8x8xf32> to vector<8xf32>
    %47 = vector.shape_cast %46 : vector<8xf32> to vector<8x1xf32>
    %cst_20 = arith.constant dense<0.000000e+00> : vector<8x8xf32>
    %48 = tpu.matmul %45, %39, %cst_20 {dimension_numbers = #tpu.dot_dimension_numbers<[1], [0], [0], [1], [0, 0, 1, 1], [], []>, precision = #tpu.contract_precision<fp32>} : vector<8x8xf32>, vector<8x8xf32>, vector<8x8xf32> -> vector<8x8xf32>
    %49 = vector.broadcast %47 : vector<8x1xf32> to vector<8x8xf32>
    %50 = arith.divf %48, %49 : vector<8x8xf32>
    %c0_21 = arith.constant 0 : index
    %c16 = arith.constant 16 : index
    %51 = vector.load %arg7[%c0_21, %c16] : memref<8x32xf32, #tpu.memory_space<vmem>>, vector<8x8xf32>
    tpu.vector_store %arg7[%c0_21, %c16], %50 {strides = array<i32>} : memref<8x32xf32, #tpu.memory_space<vmem>>, vector<8x8xf32>,
    %52 = vector.extract_strided_slice %6 {offsets = [0, 24], sizes = [8, 8], strides = [1, 1]} : vector<8x96xf32> to vector<8x8xf32>
    %53 = vector.extract_strided_slice %6 {offsets = [0, 56], sizes = [8, 8], strides = [1, 1]} : vector<8x96xf32> to vector<8x8xf32>
    %54 = vector.extract_strided_slice %6 {offsets = [0, 88], sizes = [8, 8], strides = [1, 1]} : vector<8x96xf32> to vector<8x8xf32>
    %cst_22 = arith.constant dense<0.000000e+00> : vector<8x8xf32>
    %55 = tpu.matmul %52, %53, %cst_22 {dimension_numbers = #tpu.dot_dimension_numbers<[1], [1], [0], [0], [0, 0, 1, 0], [], []>, precision = #tpu.contract_precision<fp32>} : vector<8x8xf32>, vector<8x8xf32>, vector<8x8xf32> -> vector<8x8xf32>
    %cst_23 = arith.constant dense<0xFF800000> : vector<8xf32>
    %56 = vector.multi_reduction <maximumf>, %55, %cst_23 [1] : vector<8x8xf32> to vector<8xf32>
    %57 = vector.shape_cast %56 : vector<8xf32> to vector<8x1xf32>
    %58 = vector.broadcast %57 : vector<8x1xf32> to vector<8x8xf32>
    %59 = arith.subf %55, %58 : vector<8x8xf32>
    %60 = math.exp %59 : vector<8x8xf32>
    %cst_24 = arith.constant dense<0.000000e+00> : vector<8xf32>
    %61 = vector.multi_reduction <add>, %60, %cst_24 [1] : vector<8x8xf32> to vector<8xf32>
    %62 = vector.shape_cast %61 : vector<8xf32> to vector<8x1xf32>
    %cst_25 = arith.constant dense<0.000000e+00> : vector<8x8xf32>
    %63 = tpu.matmul %60, %54, %cst_25 {dimension_numbers = #tpu.dot_dimension_numbers<[1], [0], [0], [1], [0, 0, 1, 1], [], []>, precision = #tpu.contract_precision<fp32>} : vector<8x8xf32>, vector<8x8xf32>, vector<8x8xf32> -> vector<8x8xf32>
    %64 = vector.broadcast %62 : vector<8x1xf32> to vector<8x8xf32>
    %65 = arith.divf %63, %64 : vector<8x8xf32>
    %c0_26 = arith.constant 0 : index
    %c24 = arith.constant 24 : index
    %66 = vector.load %arg7[%c0_26, %c24] : memref<8x32xf32, #tpu.memory_space<vmem>>, vector<8x8xf32>
    tpu.vector_store %arg7[%c0_26, %c24], %65 {strides = array<i32>} : memref<8x32xf32, #tpu.memory_space<vmem>>, vector<8x8xf32>,
    %c0_27 = arith.constant 0 : index
    %c0_28 = arith.constant 0 : index
    %67 = vector.load %arg7[%c0_27, %c0_28] : memref<8x32xf32, #tpu.memory_space<vmem>>, vector<8x32xf32>
    %c0_29 = arith.constant 0 : index
    %c0_30 = arith.constant 0 : index
    %68 = vector.load %arg4[%c0_29, %c0_30] : memref<32x32xf32, #tpu.memory_space<vmem>>, vector<32x32xf32>
    %cst_31 = arith.constant dense<0.000000e+00> : vector<8x32xf32>
    %69 = tpu.matmul %67, %68, %cst_31 {dimension_numbers = #tpu.dot_dimension_numbers<[1], [0], [0], [1], [0, 0, 1, 1], [], []>, precision = #tpu.contract_precision<fp32>} : vector<8x32xf32>, vector<32x32xf32>, vector<8x32xf32> -> vector<8x32xf32>
    %c0_32 = arith.constant 0 : index
    %c0_33 = arith.constant 0 : index
    %70 = vector.load %arg5[%c0_32, %c0_33] : memref<1x32xf32, #tpu.memory_space<vmem>>, vector<1x32xf32>
    %71 = vector.broadcast %70 : vector<1x32xf32> to vector<8x32xf32>
    %72 = arith.addf %69, %71 : vector<8x32xf32>
    %c0_34 = arith.constant 0 : index
    %c0_35 = arith.constant 0 : index
    %c0_36 = arith.constant 0 : index
    %73 = vector.load %arg6[%c0_34, %c0_35, %c0_36] : memref<1x8x32xf32, #tpu.memory_space<vmem>>, vector<1x8x32xf32>
    %74 = vector.shape_cast %73 : vector<1x8x32xf32> to vector<8x32xf32>
    %75 = vector.shape_cast %72 : vector<8x32xf32> to vector<1x8x32xf32>
    tpu.vector_store %arg6[%c0_34, %c0_35, %c0_36], %75 {strides = array<i32>} : memref<1x8x32xf32, #tpu.memory_space<vmem>>, vector<1x8x32xf32>,
    return
  }
  func.func @transform_0(%arg0: i32) -> (i32, i32, i32) {
    %c0_i32 = arith.constant 0 : i32
    %c0_i32_0 = arith.constant 0 : i32
    %c0_i32_1 = arith.constant 0 : i32
    return %arg0, %c0_i32, %c0_i32_0 : i32, i32, i32
  }
  func.func @transform_1(%arg0: i32) -> (i32, i32) {
    %c0_i32 = arith.constant 0 : i32
    %c0_i32_0 = arith.constant 0 : i32
    %c0_i32_1 = arith.constant 0 : i32
    return %c0_i32, %c0_i32_0 : i32, i32
  }
  func.func @transform_2(%arg0: i32) -> (i32, i32) {
    %c0_i32 = arith.constant 0 : i32
    %c0_i32_0 = arith.constant 0 : i32
    %c0_i32_1 = arith.constant 0 : i32
    return %c0_i32, %c0_i32_0 : i32, i32
  }
  func.func @transform_3(%arg0: i32) -> (i32, i32) {
    %c0_i32 = arith.constant 0 : i32
    %c0_i32_0 = arith.constant 0 : i32
    %c0_i32_1 = arith.constant 0 : i32
    return %c0_i32, %c0_i32_0 : i32, i32
  }
  func.func @transform_4(%arg0: i32) -> (i32, i32) {
    %c0_i32 = arith.constant 0 : i32
    %c0_i32_0 = arith.constant 0 : i32
    %c0_i32_1 = arith.constant 0 : i32
    return %c0_i32, %c0_i32_0 : i32, i32
  }
  func.func @transform_5(%arg0: i32) -> (i32, i32, i32) {
    %c0_i32 = arith.constant 0 : i32
    %c0_i32_0 = arith.constant 0 : i32
    %c0_i32_1 = arith.constant 0 : i32
    return %arg0, %c0_i32, %c0_i32_0 : i32, i32, i32
  }
}

</mosaic_0001>

<llo_original>
// kernel: mha_forward.1
$region0: #{mha_forward.1}
  #allocation0 [shape = 'u32[]', space=smem, size = 0x4, offset = 0x4, fixed_abs, tag = 'smem constant byte address 0x4 - core index']
  #allocation1 [shape = 'u32[72,128]{1,0:T(1,128)}', space=vmem, size = 0x9000, scoped, tag = 'internal scratch']
  #allocation2 [shape = 'f32[8,32]{1,0:T(8,128)}', space=vmem, size = 0x1000, scoped, tag = 'scratch operand']
  %s0 = inlined_call_operand.vmem [shape: f32[2,8,32], index: 0, kind: input, shape index: {}]
  %s1 = inlined_call_operand.vmem [shape: f32[32,96], index: 1, kind: input, shape index: {}]
  %s2 = inlined_call_operand.vmem [shape: f32[1,96], index: 2, kind: input, shape index: {}]
  %s3 = inlined_call_operand.vmem [shape: f32[32,32], index: 3, kind: input, shape index: {}]
  %s4 = inlined_call_operand.vmem [shape: f32[1,32], index: 4, kind: input, shape index: {}]
  %s5 = inlined_call_operand.vmem [shape: f32[2,8,32], index: 5, kind: output, shape index: {}]
  %s6 = sld [smem:[#allocation0]]
  $region53: #{mha_forward.1} parent=0
    _
  %s8 = ssub.s32 1, %s6
  %s9 = scalar_select 0, %s8, %s6
  loop: start=0, step=1, limit=4
  $region2: #{mha_forward.1} parent=0 // loop_pre_header
    _
  $region3: #{mha_forward.1} parent=0 // loop_header
    %s11 = sphi 0, %s15
    %p12 = scmp.ge.s32.totalorder %s11, 4
    %s21 = sphi 0, %s23
    %s24 = sphi 0, %s21
    %s25 = sphi 0, %s24
    %s41 = sphi 0, %s25
    %s45 = sphi 0, %s45
    %s47 = sphi 0, %s45
    %s48 = sphi 0, %s47
    %s62 = sphi 0, %s48
    %s66 = sphi 0, %s66
    %s68 = sphi 0, %s66
    %s69 = sphi 0, %s68
    %s83 = sphi 0, %s69
    %s87 = sphi 0, %s87
    %s89 = sphi 0, %s87
    %s90 = sphi 0, %s89
    %s104 = sphi 0, %s90
    %s108 = sphi 0, %s108
    %s110 = sphi 0, %s108
    %s111 = sphi 0, %s110
    %s125 = sphi 0, %s111
    %s131 = sphi 0, %s133
    %s134 = sphi 0, %s131
    %s135 = sphi 0, %s134
    %s151 = sphi 0, %s135
  $region4: #{mha_forward.1} parent=0 // loop_header_branch
    %14 = sbr.rel (%p12) target = $region8
  $region5: #{mha_forward.1} parent=0 // loop_body
    %s16 = ssub.s32 %s11, 1
    %s17 = ssub.s32 %s11, 2
    %s18 = sadd.s32 %s11, 1
    %s19 = ssub.s32 %s11, %s18
    %p20 = scmp.eq.s32.totalorder %s19, 0
    %s22 = sadd.s32 %s21, 1
    %s23 = scalar_select %p20, %s21, %s22
    %p26 = pneg %p20
    %p27 = scmp.eq.s32.totalorder %s11, 1
    %p28 = por %p26, %p27
    %p29 = scmp.ne.s32.totalorder %s21, %s24
    %p30 = scmp.eq.s32.totalorder %s11, 0
    %p31 = por %p29, %p30
    %p32 = scmp.ne.s32.totalorder %s21, %s24
    %p33 = scmp.eq.s32.totalorder %s16, 1
    %p34 = por %p32, %p33
    %p35 = scmp.ne.s32.totalorder %s24, %s25
    %p36 = scmp.eq.s32.totalorder %s16, 0
    %p37 = por %p35, %p36
    %p38 = scmp.ne.s32.totalorder %s24, %s25
    %p39 = scmp.eq.s32.totalorder %s17, 1
    %p40 = por %p38, %p39
    %p42 = scmp.ne.s32.totalorder %s25, %s41
    %p43 = scmp.eq.s32.totalorder %s17, 0
    %p44 = por %p42, %p43
    %s46 = sadd.s32 %s45, 1
    %p49 = scmp.eq.s32.totalorder %s11, 1
    %p50 = scmp.ne.s32.totalorder %s45, %s47
    %p51 = scmp.eq.s32.totalorder %s11, 0
    %p52 = por %p50, %p51
    %p53 = scmp.ne.s32.totalorder %s45, %s47
    %p54 = scmp.eq.s32.totalorder %s16, 1
    %p55 = por %p53, %p54
    %p56 = scmp.ne.s32.totalorder %s47, %s48
    %p57 = scmp.eq.s32.totalorder %s16, 0
    %p58 = por %p56, %p57
    %p59 = scmp.ne.s32.totalorder %s47, %s48
    %p60 = scmp.eq.s32.totalorder %s17, 1
    %p61 = por %p59, %p60
    %p63 = scmp.ne.s32.totalorder %s48, %s62
    %p64 = scmp.eq.s32.totalorder %s17, 0
    %p65 = por %p63, %p64
    %s67 = sadd.s32 %s66, 1
    %p70 = scmp.eq.s32.totalorder %s11, 1
    %p71 = scmp.ne.s32.totalorder %s66, %s68
    %p72 = scmp.eq.s32.totalorder %s11, 0
    %p73 = por %p71, %p72
    %p74 = scmp.ne.s32.totalorder %s66, %s68
    %p75 = scmp.eq.s32.totalorder %s16, 1
    %p76 = por %p74, %p75
    %p77 = scmp.ne.s32.totalorder %s68, %s69
    %p78 = scmp.eq.s32.totalorder %s16, 0
    %p79 = por %p77, %p78
    %p80 = scmp.ne.s32.totalorder %s68, %s69
    %p81 = scmp.eq.s32.totalorder %s17, 1
    %p82 = por %p80, %p81
    %p84 = scmp.ne.s32.totalorder %s69, %s83
    %p85 = scmp.eq.s32.totalorder %s17, 0
    %p86 = por %p84, %p85
    %s88 = sadd.s32 %s87, 1
    %p91 = scmp.eq.s32.totalorder %s11, 1
    %p92 = scmp.ne.s32.totalorder %s87, %s89
    %p93 = scmp.eq.s32.totalorder %s11, 0
    %p94 = por %p92, %p93
    %p95 = scmp.ne.s32.totalorder %s87, %s89
    %p96 = scmp.eq.s32.totalorder %s16, 1
    %p97 = por %p95, %p96
    %p98 = scmp.ne.s32.totalorder %s89, %s90
    %p99 = scmp.eq.s32.totalorder %s16, 0
    %p100 = por %p98, %p99
    %p101 = scmp.ne.s32.totalorder %s89, %s90
    %p102 = scmp.eq.s32.totalorder %s17, 1
    %p103 = por %p101, %p102
    %p105 = scmp.ne.s32.totalorder %s90, %s104
    %p106 = scmp.eq.s32.totalorder %s17, 0
    %p107 = por %p105, %p106
    %s109 = sadd.s32 %s108, 1
    %p112 = scmp.eq.s32.totalorder %s11, 1
    %p113 = scmp.ne.s32.totalorder %s108, %s110
    %p114 = scmp.eq.s32.totalorder %s11, 0
    %p115 = por %p113, %p114
    %p116 = scmp.ne.s32.totalorder %s108, %s110
    %p117 = scmp.eq.s32.totalorder %s16, 1
    %p118 = por %p116, %p117
    %p119 = scmp.ne.s32.totalorder %s110, %s111
    %p120 = scmp.eq.s32.totalorder %s16, 0
    %p121 = por %p119, %p120
    %p122 = scmp.ne.s32.totalorder %s110, %s111
    %p123 = scmp.eq.s32.totalorder %s17, 1
    %p124 = por %p122, %p123
    %p126 = scmp.ne.s32.totalorder %s111, %s125
    %p127 = scmp.eq.s32.totalorder %s17, 0
    %p128 = por %p126, %p127
    %s129 = ssub.s32 %s11, %s18
    %p130 = scmp.eq.s32.totalorder %s129, 0
    %s132 = sadd.s32 %s131, 1
    %s133 = scalar_select %p130, %s131, %s132
    %p136 = pneg %p130
    %p137 = scmp.eq.s32.totalorder %s11, 1
    %p138 = por %p136, %p137
    %p139 = scmp.ne.s32.totalorder %s131, %s134
    %p140 = scmp.eq.s32.totalorder %s11, 0
    %p141 = por %p139, %p140
    %p142 = scmp.ne.s32.totalorder %s131, %s134
    %p143 = scmp.eq.s32.totalorder %s16, 1
    %p144 = por %p142, %p143
    %p145 = scmp.ne.s32.totalorder %s134, %s135
    %p146 = scmp.eq.s32.totalorder %s16, 0
    %p147 = por %p145, %p146
    %p148 = scmp.ne.s32.totalorder %s134, %s135
    %p149 = scmp.eq.s32.totalorder %s17, 1
    %p150 = por %p148, %p149
    %p152 = scmp.ne.s32.totalorder %s135, %s151
    %p153 = scmp.eq.s32.totalorder %s17, 0
    %p154 = por %p152, %p153
    %p155 = scmp.le.s32.totalorder 1, %s11
    %p156 = scmp.lt.s32.totalorder %s11, 3
    %p157 = pnand %p155, %p156
    %p158 = pneg %p157
    // Predicated region
    $region9: #{mha_forward.1} parent=5 // pred_check
      _
    $region10: #{mha_forward.1} parent=5 // pred_check_branch
      %160 = sbr.rel (%p157) target = $region12
    $region11: #{mha_forward.1} parent=5 // pred_region
      %s161 = ssub.s32 %s11, 1
      // Predicated region
      $region13: #{mha_forward.1} parent=11 // pred_check
        %p162 = pneg %p58
      $region14: #{mha_forward.1} parent=11 // pred_check_branch
        %164 = sbr.rel (%p162) target = $region16
      $region15: #{mha_forward.1} parent=11 // pred_region
        _
      $region16: #{mha_forward.1} parent=11 // pred_fallthru
        _
      // Predicated region
      $region17: #{mha_forward.1} parent=11 // pred_check
        %p165 = pneg %p79
      $region18: #{mha_forward.1} parent=11 // pred_check_branch
        %167 = sbr.rel (%p165) target = $region20
      $region19: #{mha_forward.1} parent=11 // pred_region
        _
      $region20: #{mha_forward.1} parent=11 // pred_fallthru
        _
      // Predicated region
      $region21: #{mha_forward.1} parent=11 // pred_check
        %p168 = pneg %p100
      $region22: #{mha_forward.1} parent=11 // pred_check_branch
        %170 = sbr.rel (%p168) target = $region24
      $region23: #{mha_forward.1} parent=11 // pred_region
        _
      $region24: #{mha_forward.1} parent=11 // pred_fallthru
        _
      // Predicated region
      $region25: #{mha_forward.1} parent=11 // pred_check
        %p171 = pneg %p121
      $region26: #{mha_forward.1} parent=11 // pred_check_branch
        %173 = sbr.rel (%p171) target = $region28
      $region27: #{mha_forward.1} parent=11 // pred_region
        _
      $region28: #{mha_forward.1} parent=11 // pred_fallthru
        _
    $region12: #{mha_forward.1} parent=5 // pred_fallthru
      _
    %p174 = scmp.lt.s32.totalorder %s11, 2
    // Predicated region
    $region29: #{mha_forward.1} parent=5 // pred_check
      %p175 = pneg %p174
    $region30: #{mha_forward.1} parent=5 // pred_check_branch
      %177 = sbr.rel (%p175) target = $region32
    $region31: #{mha_forward.1} parent=5 // pred_region
      // Predicated region
      $region33: #{mha_forward.1} parent=31 // pred_check
        %p178 = pneg %p31
      $region34: #{mha_forward.1} parent=31 // pred_check_branch
        %180 = sbr.rel (%p178) target = $region36
      $region35: #{mha_forward.1} parent=31 // pred_region
        %p181 = scmp.lt.s32.totalorder %s11, 1
        %s182 = scalar_select %p181, %s11, 1
        %s183 = smul.addr %s182, 8
        %s184 = scalar_lea.vmem %s0, %s183
      $region36: #{mha_forward.1} parent=31 // pred_fallthru
        _
    $region32: #{mha_forward.1} parent=5 // pred_fallthru
      _
    %p185 = scmp.le.s32.totalorder 1, %s11
    %p186 = scmp.lt.s32.totalorder %s11, 3
    %p187 = pnand %p185, %p186
    %p188 = pneg %p187
    // Predicated region
    $region37: #{mha_forward.1} parent=5 // pred_check
      _
    $region38: #{mha_forward.1} parent=5 // pred_check_branch
      %190 = sbr.rel (%p187) target = $region40
    $region39: #{mha_forward.1} parent=5 // pred_region
      %s191 = ssub.s32 %s11, 1
      %p192 = scmp.lt.s32.totalorder %s16, 1
      %s193 = scalar_select %p192, %s16, 1
      %s194 = smul.addr %s193, 8
      %s195 = scalar_lea.vmem %s0, %s194
      %p196 = pneg %p37
      %p197 = pneg %p34
      %p198 = pneg %p58
      %p199 = pneg %p55
      %p200 = pneg %p79
      %p201 = pneg %p76
      %p202 = pneg %p100
      %p203 = pneg %p97
      %p204 = pneg %p121
      %p205 = pneg %p118
      %p206 = pneg %p147
      %p207 = pneg %p144
      %p208 = scmp.lt.s32.totalorder %s16, 1
      %s209 = scalar_select %p208, %s16, 1
      %s210 = smul.addr %s209, 8
      %s211 = scalar_lea.vmem %s5, %s210
      %p212 = scmp.lt.s32.totalorder %s16, 1
      %s213 = scalar_select %p212, %s16, 1
      %s214 = smul.addr %s213, 8
      %s215 = scalar_lea.vmem %s0, %s214
      %p216 = scmp.lt.s32.totalorder %s16, 1
      %s217 = scalar_select %p216, %s16, 1
      %s218 = smul.addr %s217, 8
      %s219 = scalar_lea.vmem %s5, %s218
      %v220 = vld [vmem:[%s215] sm:$0xff]
      %v221 = vld [vmem:[%s1] sm:$0xff]
      %v222 = vld [vmem:[%s1 + $0x8] sm:$0xff]
      %v223 = vld [vmem:[%s1 + $0x10] sm:$0xff]
      %v224 = vld [vmem:[%s1 + $0x18] sm:$0xff]
      %v225 = vld [vmem:[%s2] sm:$0x1]
      %v227 = vperm.slane %v225, 0
      %vm229 = vcmask 261120
      %v231 = vsel %vm229, %v220, 0
      %233 = vmatpush.msra.mxu0 0.0
      %234 = vmatpush.msra.mxu0 0.0
      %235 = vmatpush.msra.mxu0 0.0
      %236 = vmatpush.msra.mxu0 0.0
      %237 = vmatpush.msra.mxu0 0.0
      %238 = vmatpush.msra.mxu0 0.0
      %239 = vmatpush.msra.mxu0 0.0
      %240 = vmatpush.msra.mxu0 0.0
      %241 = vmatpush.msra.mxu0 0.0
      %242 = vmatpush.msra.mxu0 0.0
      %243 = vmatpush.msra.mxu0 0.0
      %244 = vmatpush.msra.mxu0 0.0
      %v245 = vand.u32 %v224, 4294901760
      %246 = vmatpush.msra.mxu0 %v245
      %v247 = vand.u32 %v223, 4294901760
      %248 = vmatpush.msra.mxu0 %v247
      %v249 = vand.u32 %v222, 4294901760
      %250 = vmatpush.msra.mxu0 %v249
      %v251 = vand.u32 %v221, 4294901760
      %252 = vmatpush.msra.mxu0 %v251
      %v253 = vand.u32 %v231, 4294901760
      %v254 = vsub.f32 %v231, %v253
      %v255 = vand.u32 %v254, 4294901760
      %v256 = vsub.f32 %v254, %v255
      %v257 = vand.u32 %v256, 4294901760
      %258 = vmatmul.f32.gmra.mxu0 %v257
      %v259 = vpop.f32.mrf.mxu0
      %v260 = vadd.f32 %v227, %v259
      %261 = vdwg.mxu0
      %262 = vmatpush.msra.mxu0 0.0
      %263 = vmatpush.msra.mxu0 0.0
      %264 = vmatpush.msra.mxu0 0.0
      %265 = vmatpush.msra.mxu0 0.0
      %266 = vmatpush.msra.mxu0 0.0
      %267 = vmatpush.msra.mxu0 0.0
      %268 = vmatpush.msra.mxu0 0.0
      %269 = vmatpush.msra.mxu0 0.0
      %270 = vmatpush.msra.mxu0 0.0
      %271 = vmatpush.msra.mxu0 0.0
      %272 = vmatpush.msra.mxu0 0.0
      %273 = vmatpush.msra.mxu0 0.0
      %v274 = vand.u32 %v224, 4294901760
      %v275 = vsub.f32 %v224, %v274
      %v276 = vand.u32 %v275, 4294901760
      %v277 = vsub.f32 %v275, %v276
      %v278 = vand.u32 %v277, 4294901760
      %279 = vmatpush.msra.mxu0 %v278
      %v280 = vand.u32 %v223, 4294901760
      %v281 = vsub.f32 %v223, %v280
      %v282 = vand.u32 %v281, 4294901760
      %v283 = vsub.f32 %v281, %v282
      %v284 = vand.u32 %v283, 4294901760
      %285 = vmatpush.msra.mxu0 %v284
      %v286 = vand.u32 %v222, 4294901760
      %v287 = vsub.f32 %v222, %v286
      %v288 = vand.u32 %v287, 4294901760
      %v289 = vsub.f32 %v287, %v288
      %v290 = vand.u32 %v289, 4294901760
      %291 = vmatpush.msra.mxu0 %v290
      %v292 = vand.u32 %v221, 4294901760
      %v293 = vsub.f32 %v221, %v292
      %v294 = vand.u32 %v293, 4294901760
      %v295 = vsub.f32 %v293, %v294
      %v296 = vand.u32 %v295, 4294901760
      %297 = vmatpush.msra.mxu0 %v296
      %v298 = vand.u32 %v231, 4294901760
      %299 = vmatmul.f32.gmra.mxu0 %v298
      %v300 = vpop.f32.mrf.mxu0
      %v301 = vadd.f32 %v260, %v300
      %302 = vdwg.mxu0
      %303 = vmatpush.msra.mxu0 0.0
      %304 = vmatpush.msra.mxu0 0.0
      %305 = vmatpush.msra.mxu0 0.0
      %306 = vmatpush.msra.mxu0 0.0
      %307 = vmatpush.msra.mxu0 0.0
      %308 = vmatpush.msra.mxu0 0.0
      %309 = vmatpush.msra.mxu0 0.0
      %310 = vmatpush.msra.mxu0 0.0
      %311 = vmatpush.msra.mxu0 0.0
      %312 = vmatpush.msra.mxu0 0.0
      %313 = vmatpush.msra.mxu0 0.0
      %314 = vmatpush.msra.mxu0 0.0
      %v315 = vand.u32 %v224, 4294901760
      %v316 = vsub.f32 %v224, %v315
      %317 = vmatpush.msra.mxu0 %v316
      %v318 = vand.u32 %v223, 4294901760
      %v319 = vsub.f32 %v223, %v318
      %320 = vmatpush.msra.mxu0 %v319
      %v321 = vand.u32 %v222, 4294901760
      %v322 = vsub.f32 %v222, %v321
      %323 = vmatpush.msra.mxu0 %v322
      %v324 = vand.u32 %v221, 4294901760
      %v325 = vsub.f32 %v221, %v324
      %326 = vmatpush.msra.mxu0 %v325
      %v327 = vand.u32 %v231, 4294901760
      %v328 = vsub.f32 %v231, %v327
      %329 = vmatmul.f32.gmra.mxu0 %v328
      %v330 = vpop.f32.mrf.mxu0
      %v331 = vadd.f32 %v301, %v330
      %332 = vdwg.mxu0
      %333 = vmatpush.msra.mxu0 0.0
      %334 = vmatpush.msra.mxu0 0.0
      %335 = vmatpush.msra.mxu0 0.0
      %336 = vmatpush.msra.mxu0 0.0
      %337 = vmatpush.msra.mxu0 0.0
      %338 = vmatpush.msra.mxu0 0.0
      %339 = vmatpush.msra.mxu0 0.0
      %340 = vmatpush.msra.mxu0 0.0
      %341 = vmatpush.msra.mxu0 0.0
      %342 = vmatpush.msra.mxu0 0.0
      %343 = vmatpush.msra.mxu0 0.0
      %344 = vmatpush.msra.mxu0 0.0
      %v345 = vand.u32 %v224, 4294901760
      %346 = vmatpush.msra.mxu0 %v345
      %v347 = vand.u32 %v223, 4294901760
      %348 = vmatpush.msra.mxu0 %v347
      %v349 = vand.u32 %v222, 4294901760
      %350 = vmatpush.msra.mxu0 %v349
      %v351 = vand.u32 %v221, 4294901760
      %352 = vmatpush.msra.mxu0 %v351
      %v353 = vand.u32 %v231, 4294901760
      %v354 = vsub.f32 %v231, %v353
      %v355 = vand.u32 %v354, 4294901760
      %356 = vmatmul.f32.gmra.mxu0 %v355
      %v357 = vpop.f32.mrf.mxu0
      %v358 = vadd.f32 %v331, %v357
      %359 = vdwg.mxu0
      %360 = vmatpush.msra.mxu0 0.0
      %361 = vmatpush.msra.mxu0 0.0
      %362 = vmatpush.msra.mxu0 0.0
      %363 = vmatpush.msra.mxu0 0.0
      %364 = vmatpush.msra.mxu0 0.0
      %365 = vmatpush.msra.mxu0 0.0
      %366 = vmatpush.msra.mxu0 0.0
      %367 = vmatpush.msra.mxu0 0.0
      %368 = vmatpush.msra.mxu0 0.0
      %369 = vmatpush.msra.mxu0 0.0
      %370 = vmatpush.msra.mxu0 0.0
      %371 = vmatpush.msra.mxu0 0.0
      %v372 = vand.u32 %v224, 4294901760
      %v373 = vsub.f32 %v224, %v372
      %v374 = vand.u32 %v373, 4294901760
      %375 = vmatpush.msra.mxu0 %v374
      %v376 = vand.u32 %v223, 4294901760
      %v377 = vsub.f32 %v223, %v376
      %v378 = vand.u32 %v377, 4294901760
      %379 = vmatpush.msra.mxu0 %v378
      %v380 = vand.u32 %v222, 4294901760
      %v381 = vsub.f32 %v222, %v380
      %v382 = vand.u32 %v381, 4294901760
      %383 = vmatpush.msra.mxu0 %v382
      %v384 = vand.u32 %v221, 4294901760
      %v385 = vsub.f32 %v221, %v384
      %v386 = vand.u32 %v385, 4294901760
      %387 = vmatpush.msra.mxu0 %v386
      %v388 = vand.u32 %v231, 4294901760
      %389 = vmatmul.f32.gmra.mxu0 %v388
      %v390 = vpop.f32.mrf.mxu0
      %v391 = vadd.f32 %v358, %v390
      %392 = vdwg.mxu0
      %393 = vmatpush.msra.mxu0 0.0
      %394 = vmatpush.msra.mxu0 0.0
      %395 = vmatpush.msra.mxu0 0.0
      %396 = vmatpush.msra.mxu0 0.0
      %397 = vmatpush.msra.mxu0 0.0
      %398 = vmatpush.msra.mxu0 0.0
      %399 = vmatpush.msra.mxu0 0.0
      %400 = vmatpush.msra.mxu0 0.0
      %401 = vmatpush.msra.mxu0 0.0
      %402 = vmatpush.msra.mxu0 0.0
      %403 = vmatpush.msra.mxu0 0.0
      %404 = vmatpush.msra.mxu0 0.0
      %v405 = vand.u32 %v224, 4294901760
      %406 = vmatpush.msra.mxu0 %v405
      %v407 = vand.u32 %v223, 4294901760
      %408 = vmatpush.msra.mxu0 %v407
      %v409 = vand.u32 %v222, 4294901760
      %410 = vmatpush.msra.mxu0 %v409
      %v411 = vand.u32 %v221, 4294901760
      %412 = vmatpush.msra.mxu0 %v411
      %v413 = vand.u32 %v231, 4294901760
      %414 = vmatmul.f32.gmra.mxu0 %v413
      %v415 = vpop.f32.mrf.mxu0
      %v416 = vadd.f32 %v391, %v415
      %417 = vdwg.mxu0
      %419 = vrot.lane.b32.xlu0 %v416, 96
      %v420 = vpop.permute.xlu0 %419
      %vm421 = vcmask 64512
      %v422 = vsel %vm421, %v416, 0
      %v424 = vsel %vm421, %v420, 0
      %426 = vmatpush.xpose.msra.mxu0 0.0
      %427 = vmatpush.xpose.msra.mxu0 0.0
      %428 = vmatpush.xpose.msra.mxu0 0.0
      %429 = vmatpush.xpose.msra.mxu0 0.0
      %430 = vmatpush.xpose.msra.mxu0 0.0
      %431 = vmatpush.xpose.msra.mxu0 0.0
      %432 = vmatpush.xpose.msra.mxu0 0.0
      %433 = vmatpush.xpose.msra.mxu0 0.0
      %434 = vmatpush.xpose.msra.mxu0 0.0
      %435 = vmatpush.xpose.msra.mxu0 0.0
      %436 = vmatpush.xpose.msra.mxu0 0.0
      %437 = vmatpush.xpose.msra.mxu0 0.0
      %438 = vmatpush.xpose.msra.mxu0 0.0
      %439 = vmatpush.xpose.msra.mxu0 0.0
      %440 = vmatpush.xpose.msra.mxu0 0.0
      %v441 = vand.u32 %v424, 4294901760
      %442 = vmatpush.xpose.msra.mxu0 %v441
      %v443 = vand.u32 %v422, 4294901760
      %v444 = vsub.f32 %v422, %v443
      %v445 = vand.u32 %v444, 4294901760
      %v446 = vsub.f32 %v444, %v445
      %v447 = vand.u32 %v446, 4294901760
      %448 = vmatmul.f32.gmra.mxu0 %v447
      %v449 = vpop.f32.mrf.mxu0
      %v450 = vadd.f32 0.0, %v449
      %451 = vdwg.mxu0
      %452 = vmatpush.xpose.msra.mxu0 0.0
      %453 = vmatpush.xpose.msra.mxu0 0.0
      %454 = vmatpush.xpose.msra.mxu0 0.0
      %455 = vmatpush.xpose.msra.mxu0 0.0
      %456 = vmatpush.xpose.msra.mxu0 0.0
      %457 = vmatpush.xpose.msra.mxu0 0.0
      %458 = vmatpush.xpose.msra.mxu0 0.0
      %459 = vmatpush.xpose.msra.mxu0 0.0
      %460 = vmatpush.xpose.msra.mxu0 0.0
      %461 = vmatpush.xpose.msra.mxu0 0.0
      %462 = vmatpush.xpose.msra.mxu0 0.0
      %463 = vmatpush.xpose.msra.mxu0 0.0
      %464 = vmatpush.xpose.msra.mxu0 0.0
      %465 = vmatpush.xpose.msra.mxu0 0.0
      %466 = vmatpush.xpose.msra.mxu0 0.0
      %v467 = vand.u32 %v424, 4294901760
      %v468 = vsub.f32 %v424, %v467
      %v469 = vand.u32 %v468, 4294901760
      %v470 = vsub.f32 %v468, %v469
      %v471 = vand.u32 %v470, 4294901760
      %472 = vmatpush.xpose.msra.mxu0 %v471
      %v473 = vand.u32 %v422, 4294901760
      %474 = vmatmul.f32.gmra.mxu0 %v473
      %v475 = vpop.f32.mrf.mxu0
      %v476 = vadd.f32 %v450, %v475
      %477 = vdwg.mxu0
      %478 = vmatpush.xpose.msra.mxu0 0.0
      %479 = vmatpush.xpose.msra.mxu0 0.0
      %480 = vmatpush.xpose.msra.mxu0 0.0
      %481 = vmatpush.xpose.msra.mxu0 0.0
      %482 = vmatpush.xpose.msra.mxu0 0.0
      %483 = vmatpush.xpose.msra.mxu0 0.0
      %484 = vmatpush.xpose.msra.mxu0 0.0
      %485 = vmatpush.xpose.msra.mxu0 0.0
      %486 = vmatpush.xpose.msra.mxu0 0.0
      %487 = vmatpush.xpose.msra.mxu0 0.0
      %488 = vmatpush.xpose.msra.mxu0 0.0
      %489 = vmatpush.xpose.msra.mxu0 0.0
      %490 = vmatpush.xpose.msra.mxu0 0.0
      %491 = vmatpush.xpose.msra.mxu0 0.0
      %492 = vmatpush.xpose.msra.mxu0 0.0
      %v493 = vand.u32 %v424, 4294901760
      %v494 = vsub.f32 %v424, %v493
      %495 = vmatpush.xpose.msra.mxu0 %v494
      %v496 = vand.u32 %v422, 4294901760
      %v497 = vsub.f32 %v422, %v496
      %498 = vmatmul.f32.gmra.mxu0 %v497
      %v499 = vpop.f32.mrf.mxu0
      %v500 = vadd.f32 %v476, %v499
      %501 = vdwg.mxu0
      %502 = vmatpush.xpose.msra.mxu0 0.0
      %503 = vmatpush.xpose.msra.mxu0 0.0
      %504 = vmatpush.xpose.msra.mxu0 0.0
      %505 = vmatpush.xpose.msra.mxu0 0.0
      %506 = vmatpush.xpose.msra.mxu0 0.0
      %507 = vmatpush.xpose.msra.mxu0 0.0
      %508 = vmatpush.xpose.msra.mxu0 0.0
      %509 = vmatpush.xpose.msra.mxu0 0.0
      %510 = vmatpush.xpose.msra.mxu0 0.0
      %511 = vmatpush.xpose.msra.mxu0 0.0
      %512 = vmatpush.xpose.msra.mxu0 0.0
      %513 = vmatpush.xpose.msra.mxu0 0.0
      %514 = vmatpush.xpose.msra.mxu0 0.0
      %515 = vmatpush.xpose.msra.mxu0 0.0
      %516 = vmatpush.xpose.msra.mxu0 0.0
      %v517 = vand.u32 %v424, 4294901760
      %518 = vmatpush.xpose.msra.mxu0 %v517
      %v519 = vand.u32 %v422, 4294901760
      %v520 = vsub.f32 %v422, %v519
      %v521 = vand.u32 %v520, 4294901760
      %522 = vmatmul.f32.gmra.mxu0 %v521
      %v523 = vpop.f32.mrf.mxu0
      %v524 = vadd.f32 %v500, %v523
      %525 = vdwg.mxu0
      %526 = vmatpush.xpose.msra.mxu0 0.0
      %527 = vmatpush.xpose.msra.mxu0 0.0
      %528 = vmatpush.xpose.msra.mxu0 0.0
      %529 = vmatpush.xpose.msra.mxu0 0.0
      %530 = vmatpush.xpose.msra.mxu0 0.0
      %531 = vmatpush.xpose.msra.mxu0 0.0
      %532 = vmatpush.xpose.msra.mxu0 0.0
      %533 = vmatpush.xpose.msra.mxu0 0.0
      %534 = vmatpush.xpose.msra.mxu0 0.0
      %535 = vmatpush.xpose.msra.mxu0 0.0
      %536 = vmatpush.xpose.msra.mxu0 0.0
      %537 = vmatpush.xpose.msra.mxu0 0.0
      %538 = vmatpush.xpose.msra.mxu0 0.0
      %539 = vmatpush.xpose.msra.mxu0 0.0
      %540 = vmatpush.xpose.msra.mxu0 0.0
      %v541 = vand.u32 %v424, 4294901760
      %v542 = vsub.f32 %v424, %v541
      %v543 = vand.u32 %v542, 4294901760
      %544 = vmatpush.xpose.msra.mxu0 %v543
      %v545 = vand.u32 %v422, 4294901760
      %546 = vmatmul.f32.gmra.mxu0 %v545
      %v547 = vpop.f32.mrf.mxu0
      %v548 = vadd.f32 %v524, %v547
      %549 = vdwg.mxu0
      %550 = vmatpush.xpose.msra.mxu0 0.0
      %551 = vmatpush.xpose.msra.mxu0 0.0
      %552 = vmatpush.xpose.msra.mxu0 0.0
      %553 = vmatpush.xpose.msra.mxu0 0.0
      %554 = vmatpush.xpose.msra.mxu0 0.0
      %555 = vmatpush.xpose.msra.mxu0 0.0
      %556 = vmatpush.xpose.msra.mxu0 0.0
      %557 = vmatpush.xpose.msra.mxu0 0.0
      %558 = vmatpush.xpose.msra.mxu0 0.0
      %559 = vmatpush.xpose.msra.mxu0 0.0
      %560 = vmatpush.xpose.msra.mxu0 0.0
      %561 = vmatpush.xpose.msra.mxu0 0.0
      %562 = vmatpush.xpose.msra.mxu0 0.0
      %563 = vmatpush.xpose.msra.mxu0 0.0
      %564 = vmatpush.xpose.msra.mxu0 0.0
      %v565 = vand.u32 %v424, 4294901760
      %566 = vmatpush.xpose.msra.mxu0 %v565
      %v567 = vand.u32 %v422, 4294901760
      %568 = vmatmul.f32.gmra.mxu0 %v567
      %v569 = vpop.f32.mrf.mxu0
      %v570 = vadd.f32 %v548, %v569
      %571 = vdwg.mxu0
      %v572 = vsel %vm421, %v570, -inf
      %573 = vmax.xlane.f32.xlu0 %v572
      %v574 = vpop.xlane.xlu0 %573
      %v575 = vsub.f32 %v570, %v574
      %v576 = vmul.f32 %v575, 1.442695
      %v577 = vpow.pop %v576
      %v578 = vsel %vm421, %v577, 0.0
      %579 = vadd.xlane.f32.xlu0 %v578
      %v580 = vpop.xlane.xlu0 %579
      %581 = vrot.lane.b32.xlu0 %v416, 64
      %v582 = vpop.permute.xlu0 %581
      %v585 = vsel %vm421, %v577, 0
      %587 = vmatpush.msra.mxu0 0.0
      %588 = vmatpush.msra.mxu0 0.0
      %589 = vmatpush.msra.mxu0 0.0
      %590 = vmatpush.msra.mxu0 0.0
      %591 = vmatpush.msra.mxu0 0.0
      %592 = vmatpush.msra.mxu0 0.0
      %593 = vmatpush.msra.mxu0 0.0
      %594 = vmatpush.msra.mxu0 0.0
      %595 = vmatpush.msra.mxu0 0.0
      %596 = vmatpush.msra.mxu0 0.0
      %597 = vmatpush.msra.mxu0 0.0
      %598 = vmatpush.msra.mxu0 0.0
      %599 = vmatpush.msra.mxu0 0.0
      %600 = vmatpush.msra.mxu0 0.0
      %601 = vmatpush.msra.mxu0 0.0
      %v602 = vand.u32 %v582, 4294901760
      %603 = vmatpush.msra.mxu0 %v602
      %v604 = vand.u32 %v585, 4294901760
      %v605 = vsub.f32 %v585, %v604
      %v606 = vand.u32 %v605, 4294901760
      %v607 = vsub.f32 %v605, %v606
      %v608 = vand.u32 %v607, 4294901760
      %609 = vmatmul.f32.gmra.mxu0 %v608
      %v610 = vpop.f32.mrf.mxu0
      %v611 = vadd.f32 0.0, %v610
      %612 = vdwg.mxu0
      %613 = vmatpush.msra.mxu0 0.0
      %614 = vmatpush.msra.mxu0 0.0
      %615 = vmatpush.msra.mxu0 0.0
      %616 = vmatpush.msra.mxu0 0.0
      %617 = vmatpush.msra.mxu0 0.0
      %618 = vmatpush.msra.mxu0 0.0
      %619 = vmatpush.msra.mxu0 0.0
      %620 = vmatpush.msra.mxu0 0.0
      %621 = vmatpush.msra.mxu0 0.0
      %622 = vmatpush.msra.mxu0 0.0
      %623 = vmatpush.msra.mxu0 0.0
      %624 = vmatpush.msra.mxu0 0.0
      %625 = vmatpush.msra.mxu0 0.0
      %626 = vmatpush.msra.mxu0 0.0
      %627 = vmatpush.msra.mxu0 0.0
      %v628 = vand.u32 %v582, 4294901760
      %v629 = vsub.f32 %v582, %v628
      %v630 = vand.u32 %v629, 4294901760
      %v631 = vsub.f32 %v629, %v630
      %v632 = vand.u32 %v631, 4294901760
      %633 = vmatpush.msra.mxu0 %v632
      %v634 = vand.u32 %v585, 4294901760
      %635 = vmatmul.f32.gmra.mxu0 %v634
      %v636 = vpop.f32.mrf.mxu0
      %v637 = vadd.f32 %v611, %v636
      %638 = vdwg.mxu0
      %639 = vmatpush.msra.mxu0 0.0
      %640 = vmatpush.msra.mxu0 0.0
      %641 = vmatpush.msra.mxu0 0.0
      %642 = vmatpush.msra.mxu0 0.0
      %643 = vmatpush.msra.mxu0 0.0
      %644 = vmatpush.msra.mxu0 0.0
      %645 = vmatpush.msra.mxu0 0.0
      %646 = vmatpush.msra.mxu0 0.0
      %647 = vmatpush.msra.mxu0 0.0
      %648 = vmatpush.msra.mxu0 0.0
      %649 = vmatpush.msra.mxu0 0.0
      %650 = vmatpush.msra.mxu0 0.0
      %651 = vmatpush.msra.mxu0 0.0
      %652 = vmatpush.msra.mxu0 0.0
      %653 = vmatpush.msra.mxu0 0.0
      %v654 = vand.u32 %v582, 4294901760
      %v655 = vsub.f32 %v582, %v654
      %656 = vmatpush.msra.mxu0 %v655
      %v657 = vand.u32 %v585, 4294901760
      %v658 = vsub.f32 %v585, %v657
      %659 = vmatmul.f32.gmra.mxu0 %v658
      %v660 = vpop.f32.mrf.mxu0
      %v661 = vadd.f32 %v637, %v660
      %662 = vdwg.mxu0
      %663 = vmatpush.msra.mxu0 0.0
      %664 = vmatpush.msra.mxu0 0.0
      %665 = vmatpush.msra.mxu0 0.0
      %666 = vmatpush.msra.mxu0 0.0
      %667 = vmatpush.msra.mxu0 0.0
      %668 = vmatpush.msra.mxu0 0.0
      %669 = vmatpush.msra.mxu0 0.0
      %670 = vmatpush.msra.mxu0 0.0
      %671 = vmatpush.msra.mxu0 0.0
      %672 = vmatpush.msra.mxu0 0.0
      %673 = vmatpush.msra.mxu0 0.0
      %674 = vmatpush.msra.mxu0 0.0
      %675 = vmatpush.msra.mxu0 0.0
      %676 = vmatpush.msra.mxu0 0.0
      %677 = vmatpush.msra.mxu0 0.0
      %v678 = vand.u32 %v582, 4294901760
      %679 = vmatpush.msra.mxu0 %v678
      %v680 = vand.u32 %v585, 4294901760
      %v681 = vsub.f32 %v585, %v680
      %v682 = vand.u32 %v681, 4294901760
      %683 = vmatmul.f32.gmra.mxu0 %v682
      %v684 = vpop.f32.mrf.mxu0
      %v685 = vadd.f32 %v661, %v684
      %686 = vdwg.mxu0
      %687 = vmatpush.msra.mxu0 0.0
      %688 = vmatpush.msra.mxu0 0.0
      %689 = vmatpush.msra.mxu0 0.0
      %690 = vmatpush.msra.mxu0 0.0
      %691 = vmatpush.msra.mxu0 0.0
      %692 = vmatpush.msra.mxu0 0.0
      %693 = vmatpush.msra.mxu0 0.0
      %694 = vmatpush.msra.mxu0 0.0
      %695 = vmatpush.msra.mxu0 0.0
      %696 = vmatpush.msra.mxu0 0.0
      %697 = vmatpush.msra.mxu0 0.0
      %698 = vmatpush.msra.mxu0 0.0
      %699 = vmatpush.msra.mxu0 0.0
      %700 = vmatpush.msra.mxu0 0.0
      %701 = vmatpush.msra.mxu0 0.0
      %v702 = vand.u32 %v582, 4294901760
      %v703 = vsub.f32 %v582, %v702
      %v704 = vand.u32 %v703, 4294901760
      %705 = vmatpush.msra.mxu0 %v704
      %v706 = vand.u32 %v585, 4294901760
      %707 = vmatmul.f32.gmra.mxu0 %v706
      %v708 = vpop.f32.mrf.mxu0
      %v709 = vadd.f32 %v685, %v708
      %710 = vdwg.mxu0
      %711 = vmatpush.msra.mxu0 0.0
      %712 = vmatpush.msra.mxu0 0.0
      %713 = vmatpush.msra.mxu0 0.0
      %714 = vmatpush.msra.mxu0 0.0
      %715 = vmatpush.msra.mxu0 0.0
      %716 = vmatpush.msra.mxu0 0.0
      %717 = vmatpush.msra.mxu0 0.0
      %718 = vmatpush.msra.mxu0 0.0
      %719 = vmatpush.msra.mxu0 0.0
      %720 = vmatpush.msra.mxu0 0.0
      %721 = vmatpush.msra.mxu0 0.0
      %722 = vmatpush.msra.mxu0 0.0
      %723 = vmatpush.msra.mxu0 0.0
      %724 = vmatpush.msra.mxu0 0.0
      %725 = vmatpush.msra.mxu0 0.0
      %v726 = vand.u32 %v582, 4294901760
      %727 = vmatpush.msra.mxu0 %v726
      %v728 = vand.u32 %v585, 4294901760
      %729 = vmatmul.f32.gmra.mxu0 %v728
      %v730 = vpop.f32.mrf.mxu0
      %v731 = vadd.f32 %v709, %v730
      %732 = vdwg.mxu0
      %v733 = vrcp.pop %v580
      %v734 = vmul.f32 %v580, %v733
      %v735 = vsub.f32 1.0, %v734
      %v736 = vmul.f32 %v733, %v735
      %v737 = vadd.f32 %v733, %v736
      %vm738 = vweird.f32 %v580
      %vm739 = vweird.f32 %v733
      %vm740 = vmor %vm738, %vm739
      %v741 = vsel %vm740, %v733, %v737
      %v742 = vand.u32 2147483647, %v580
      %vm743 = vcmp.eq.f32.partialorder %v742, 8.507059e+37
      %v744 = vand.u32 %v580, 2147483648
      %v745 = vor.u32 1.1754944e-38, %v744
      %v746 = vsel %vm743, %v745, %v741
      %v747 = vmul.f32 %v731, %v746
      %748 = vst.msk [vmem:[#allocation2] sm:$0xff] %vm421, %v747
      %749 = vrot.lane.b32.xlu0 %v416, 120
      %v750 = vpop.permute.xlu0 %749
      %751 = vrot.lane.b32.xlu0 %v416, 88
      %v752 = vpop.permute.xlu0 %751
      %v753 = vsel %vm421, %v750, 0
      %v755 = vsel %vm421, %v752, 0
      %757 = vmatpush.xpose.msra.mxu0 0.0
      %758 = vmatpush.xpose.msra.mxu0 0.0
      %759 = vmatpush.xpose.msra.mxu0 0.0
      %760 = vmatpush.xpose.msra.mxu0 0.0
      %761 = vmatpush.xpose.msra.mxu0 0.0
      %762 = vmatpush.xpose.msra.mxu0 0.0
      %763 = vmatpush.xpose.msra.mxu0 0.0
      %764 = vmatpush.xpose.msra.mxu0 0.0
      %765 = vmatpush.xpose.msra.mxu0 0.0
      %766 = vmatpush.xpose.msra.mxu0 0.0
      %767 = vmatpush.xpose.msra.mxu0 0.0
      %768 = vmatpush.xpose.msra.mxu0 0.0
      %769 = vmatpush.xpose.msra.mxu0 0.0
      %770 = vmatpush.xpose.msra.mxu0 0.0
      %771 = vmatpush.xpose.msra.mxu0 0.0
      %v772 = vand.u32 %v755, 4294901760
      %773 = vmatpush.xpose.msra.mxu0 %v772
      %v774 = vand.u32 %v753, 4294901760
      %v775 = vsub.f32 %v753, %v774
      %v776 = vand.u32 %v775, 4294901760
      %v777 = vsub.f32 %v775, %v776
      %v778 = vand.u32 %v777, 4294901760
      %779 = vmatmul.f32.gmra.mxu0 %v778
      %v780 = vpop.f32.mrf.mxu0
      %v781 = vadd.f32 0.0, %v780
      %782 = vdwg.mxu0
      %783 = vmatpush.xpose.msra.mxu0 0.0
      %784 = vmatpush.xpose.msra.mxu0 0.0
      %785 = vmatpush.xpose.msra.mxu0 0.0
      %786 = vmatpush.xpose.msra.mxu0 0.0
      %787 = vmatpush.xpose.msra.mxu0 0.0
      %788 = vmatpush.xpose.msra.mxu0 0.0
      %789 = vmatpush.xpose.msra.mxu0 0.0
      %790 = vmatpush.xpose.msra.mxu0 0.0
      %791 = vmatpush.xpose.msra.mxu0 0.0
      %792 = vmatpush.xpose.msra.mxu0 0.0
      %793 = vmatpush.xpose.msra.mxu0 0.0
      %794 = vmatpush.xpose.msra.mxu0 0.0
      %795 = vmatpush.xpose.msra.mxu0 0.0
      %796 = vmatpush.xpose.msra.mxu0 0.0
      %797 = vmatpush.xpose.msra.mxu0 0.0
      %v798 = vand.u32 %v755, 4294901760
      %v799 = vsub.f32 %v755, %v798
      %v800 = vand.u32 %v799, 4294901760
      %v801 = vsub.f32 %v799, %v800
      %v802 = vand.u32 %v801, 4294901760
      %803 = vmatpush.xpose.msra.mxu0 %v802
      %v804 = vand.u32 %v753, 4294901760
      %805 = vmatmul.f32.gmra.mxu0 %v804
      %v806 = vpop.f32.mrf.mxu0
      %v807 = vadd.f32 %v781, %v806
      %808 = vdwg.mxu0
      %809 = vmatpush.xpose.msra.mxu0 0.0
      %810 = vmatpush.xpose.msra.mxu0 0.0
      %811 = vmatpush.xpose.msra.mxu0 0.0
      %812 = vmatpush.xpose.msra.mxu0 0.0
      %813 = vmatpush.xpose.msra.mxu0 0.0
      %814 = vmatpush.xpose.msra.mxu0 0.0
      %815 = vmatpush.xpose.msra.mxu0 0.0
      %816 = vmatpush.xpose.msra.mxu0 0.0
      %817 = vmatpush.xpose.msra.mxu0 0.0
      %818 = vmatpush.xpose.msra.mxu0 0.0
      %819 = vmatpush.xpose.msra.mxu0 0.0
      %820 = vmatpush.xpose.msra.mxu0 0.0
      %821 = vmatpush.xpose.msra.mxu0 0.0
      %822 = vmatpush.xpose.msra.mxu0 0.0
      %823 = vmatpush.xpose.msra.mxu0 0.0
      %v824 = vand.u32 %v755, 4294901760
      %v825 = vsub.f32 %v755, %v824
      %826 = vmatpush.xpose.msra.mxu0 %v825
      %v827 = vand.u32 %v753, 4294901760
      %v828 = vsub.f32 %v753, %v827
      %829 = vmatmul.f32.gmra.mxu0 %v828
      %v830 = vpop.f32.mrf.mxu0
      %v831 = vadd.f32 %v807, %v830
      %832 = vdwg.mxu0
      %833 = vmatpush.xpose.msra.mxu0 0.0
      %834 = vmatpush.xpose.msra.mxu0 0.0
      %835 = vmatpush.xpose.msra.mxu0 0.0
      %836 = vmatpush.xpose.msra.mxu0 0.0
      %837 = vmatpush.xpose.msra.mxu0 0.0
      %838 = vmatpush.xpose.msra.mxu0 0.0
      %839 = vmatpush.xpose.msra.mxu0 0.0
      %840 = vmatpush.xpose.msra.mxu0 0.0
      %841 = vmatpush.xpose.msra.mxu0 0.0
      %842 = vmatpush.xpose.msra.mxu0 0.0
      %843 = vmatpush.xpose.msra.mxu0 0.0
      %844 = vmatpush.xpose.msra.mxu0 0.0
      %845 = vmatpush.xpose.msra.mxu0 0.0
      %846 = vmatpush.xpose.msra.mxu0 0.0
      %847 = vmatpush.xpose.msra.mxu0 0.0
      %v848 = vand.u32 %v755, 4294901760
      %849 = vmatpush.xpose.msra.mxu0 %v848
      %v850 = vand.u32 %v753, 4294901760
      %v851 = vsub.f32 %v753, %v850
      %v852 = vand.u32 %v851, 4294901760
      %853 = vmatmul.f32.gmra.mxu0 %v852
      %v854 = vpop.f32.mrf.mxu0
      %v855 = vadd.f32 %v831, %v854
      %856 = vdwg.mxu0
      %857 = vmatpush.xpose.msra.mxu0 0.0
      %858 = vmatpush.xpose.msra.mxu0 0.0
      %859 = vmatpush.xpose.msra.mxu0 0.0
      %860 = vmatpush.xpose.msra.mxu0 0.0
      %861 = vmatpush.xpose.msra.mxu0 0.0
      %862 = vmatpush.xpose.msra.mxu0 0.0
      %863 = vmatpush.xpose.msra.mxu0 0.0
      %864 = vmatpush.xpose.msra.mxu0 0.0
      %865 = vmatpush.xpose.msra.mxu0 0.0
      %866 = vmatpush.xpose.msra.mxu0 0.0
      %867 = vmatpush.xpose.msra.mxu0 0.0
      %868 = vmatpush.xpose.msra.mxu0 0.0
      %869 = vmatpush.xpose.msra.mxu0 0.0
      %870 = vmatpush.xpose.msra.mxu0 0.0
      %871 = vmatpush.xpose.msra.mxu0 0.0
      %v872 = vand.u32 %v755, 4294901760
      %v873 = vsub.f32 %v755, %v872
      %v874 = vand.u32 %v873, 4294901760
      %875 = vmatpush.xpose.msra.mxu0 %v874
      %v876 = vand.u32 %v753, 4294901760
      %877 = vmatmul.f32.gmra.mxu0 %v876
      %v878 = vpop.f32.mrf.mxu0
      %v879 = vadd.f32 %v855, %v878
      %880 = vdwg.mxu0
      %881 = vmatpush.xpose.msra.mxu0 0.0
      %882 = vmatpush.xpose.msra.mxu0 0.0
      %883 = vmatpush.xpose.msra.mxu0 0.0
      %884 = vmatpush.xpose.msra.mxu0 0.0
      %885 = vmatpush.xpose.msra.mxu0 0.0
      %886 = vmatpush.xpose.msra.mxu0 0.0
      %887 = vmatpush.xpose.msra.mxu0 0.0
      %888 = vmatpush.xpose.msra.mxu0 0.0
      %889 = vmatpush.xpose.msra.mxu0 0.0
      %890 = vmatpush.xpose.msra.mxu0 0.0
      %891 = vmatpush.xpose.msra.mxu0 0.0
      %892 = vmatpush.xpose.msra.mxu0 0.0
      %893 = vmatpush.xpose.msra.mxu0 0.0
      %894 = vmatpush.xpose.msra.mxu0 0.0
      %895 = vmatpush.xpose.msra.mxu0 0.0
      %v896 = vand.u32 %v755, 4294901760
      %897 = vmatpush.xpose.msra.mxu0 %v896
      %v898 = vand.u32 %v753, 4294901760
      %899 = vmatmul.f32.gmra.mxu0 %v898
      %v900 = vpop.f32.mrf.mxu0
      %v901 = vadd.f32 %v879, %v900
      %902 = vdwg.mxu0
      %v903 = vsel %vm421, %v901, -inf
      %904 = vmax.xlane.f32.xlu0 %v903
      %v905 = vpop.xlane.xlu0 %904
      %v906 = vsub.f32 %v901, %v905
      %v907 = vmul.f32 %v906, 1.442695
      %v908 = vpow.pop %v907
      %v909 = vsel %vm421, %v908, 0.0
      %910 = vadd.xlane.f32.xlu0 %v909
      %v911 = vpop.xlane.xlu0 %910
      %912 = vrot.lane.b32.xlu0 %v416, 56
      %v913 = vpop.permute.xlu0 %912
      %v916 = vsel %vm421, %v908, 0
      %918 = vmatpush.msra.mxu0 0.0
      %919 = vmatpush.msra.mxu0 0.0
      %920 = vmatpush.msra.mxu0 0.0
      %921 = vmatpush.msra.mxu0 0.0
      %922 = vmatpush.msra.mxu0 0.0
      %923 = vmatpush.msra.mxu0 0.0
      %924 = vmatpush.msra.mxu0 0.0
      %925 = vmatpush.msra.mxu0 0.0
      %926 = vmatpush.msra.mxu0 0.0
      %927 = vmatpush.msra.mxu0 0.0
      %928 = vmatpush.msra.mxu0 0.0
      %929 = vmatpush.msra.mxu0 0.0
      %930 = vmatpush.msra.mxu0 0.0
      %931 = vmatpush.msra.mxu0 0.0
      %932 = vmatpush.msra.mxu0 0.0
      %v933 = vand.u32 %v913, 4294901760
      %934 = vmatpush.msra.mxu0 %v933
      %v935 = vand.u32 %v916, 4294901760
      %v936 = vsub.f32 %v916, %v935
      %v937 = vand.u32 %v936, 4294901760
      %v938 = vsub.f32 %v936, %v937
      %v939 = vand.u32 %v938, 4294901760
      %940 = vmatmul.f32.gmra.mxu0 %v939
      %v941 = vpop.f32.mrf.mxu0
      %v942 = vadd.f32 0.0, %v941
      %943 = vdwg.mxu0
      %944 = vmatpush.msra.mxu0 0.0
      %945 = vmatpush.msra.mxu0 0.0
      %946 = vmatpush.msra.mxu0 0.0
      %947 = vmatpush.msra.mxu0 0.0
      %948 = vmatpush.msra.mxu0 0.0
      %949 = vmatpush.msra.mxu0 0.0
      %950 = vmatpush.msra.mxu0 0.0
      %951 = vmatpush.msra.mxu0 0.0
      %952 = vmatpush.msra.mxu0 0.0
      %953 = vmatpush.msra.mxu0 0.0
      %954 = vmatpush.msra.mxu0 0.0
      %955 = vmatpush.msra.mxu0 0.0
      %956 = vmatpush.msra.mxu0 0.0
      %957 = vmatpush.msra.mxu0 0.0
      %958 = vmatpush.msra.mxu0 0.0
      %v959 = vand.u32 %v913, 4294901760
      %v960 = vsub.f32 %v913, %v959
      %v961 = vand.u32 %v960, 4294901760
      %v962 = vsub.f32 %v960, %v961
      %v963 = vand.u32 %v962, 4294901760
      %964 = vmatpush.msra.mxu0 %v963
      %v965 = vand.u32 %v916, 4294901760
      %966 = vmatmul.f32.gmra.mxu0 %v965
      %v967 = vpop.f32.mrf.mxu0
      %v968 = vadd.f32 %v942, %v967
      %969 = vdwg.mxu0
      %970 = vmatpush.msra.mxu0 0.0
      %971 = vmatpush.msra.mxu0 0.0
      %972 = vmatpush.msra.mxu0 0.0
      %973 = vmatpush.msra.mxu0 0.0
      %974 = vmatpush.msra.mxu0 0.0
      %975 = vmatpush.msra.mxu0 0.0
      %976 = vmatpush.msra.mxu0 0.0
      %977 = vmatpush.msra.mxu0 0.0
      %978 = vmatpush.msra.mxu0 0.0
      %979 = vmatpush.msra.mxu0 0.0
      %980 = vmatpush.msra.mxu0 0.0
      %981 = vmatpush.msra.mxu0 0.0
      %982 = vmatpush.msra.mxu0 0.0
      %983 = vmatpush.msra.mxu0 0.0
      %984 = vmatpush.msra.mxu0 0.0
      %v985 = vand.u32 %v913, 4294901760
      %v986 = vsub.f32 %v913, %v985
      %987 = vmatpush.msra.mxu0 %v986
      %v988 = vand.u32 %v916, 4294901760
      %v989 = vsub.f32 %v916, %v988
      %990 = vmatmul.f32.gmra.mxu0 %v989
      %v991 = vpop.f32.mrf.mxu0
      %v992 = vadd.f32 %v968, %v991
      %993 = vdwg.mxu0
      %994 = vmatpush.msra.mxu0 0.0
      %995 = vmatpush.msra.mxu0 0.0
      %996 = vmatpush.msra.mxu0 0.0
      %997 = vmatpush.msra.mxu0 0.0
      %998 = vmatpush.msra.mxu0 0.0
      %999 = vmatpush.msra.mxu0 0.0
      %1000 = vmatpush.msra.mxu0 0.0
      %1001 = vmatpush.msra.mxu0 0.0
      %1002 = vmatpush.msra.mxu0 0.0
      %1003 = vmatpush.msra.mxu0 0.0
      %1004 = vmatpush.msra.mxu0 0.0
      %1005 = vmatpush.msra.mxu0 0.0
      %1006 = vmatpush.msra.mxu0 0.0
      %1007 = vmatpush.msra.mxu0 0.0
      %1008 = vmatpush.msra.mxu0 0.0
      %v1009 = vand.u32 %v913, 4294901760
      %1010 = vmatpush.msra.mxu0 %v1009
      %v1011 = vand.u32 %v916, 4294901760
      %v1012 = vsub.f32 %v916, %v1011
      %v1013 = vand.u32 %v1012, 4294901760
      %1014 = vmatmul.f32.gmra.mxu0 %v1013
      %v1015 = vpop.f32.mrf.mxu0
      %v1016 = vadd.f32 %v992, %v1015
      %1017 = vdwg.mxu0
      %1018 = vmatpush.msra.mxu0 0.0
      %1019 = vmatpush.msra.mxu0 0.0
      %1020 = vmatpush.msra.mxu0 0.0
      %1021 = vmatpush.msra.mxu0 0.0
      %1022 = vmatpush.msra.mxu0 0.0
      %1023 = vmatpush.msra.mxu0 0.0
      %1024 = vmatpush.msra.mxu0 0.0
      %1025 = vmatpush.msra.mxu0 0.0
      %1026 = vmatpush.msra.mxu0 0.0
      %1027 = vmatpush.msra.mxu0 0.0
      %1028 = vmatpush.msra.mxu0 0.0
      %1029 = vmatpush.msra.mxu0 0.0
      %1030 = vmatpush.msra.mxu0 0.0
      %1031 = vmatpush.msra.mxu0 0.0
      %1032 = vmatpush.msra.mxu0 0.0
      %v1033 = vand.u32 %v913, 4294901760
      %v1034 = vsub.f32 %v913, %v1033
      %v1035 = vand.u32 %v1034, 4294901760
      %1036 = vmatpush.msra.mxu0 %v1035
      %v1037 = vand.u32 %v916, 4294901760
      %1038 = vmatmul.f32.gmra.mxu0 %v1037
      %v1039 = vpop.f32.mrf.mxu0
      %v1040 = vadd.f32 %v1016, %v1039
      %1041 = vdwg.mxu0
      %1042 = vmatpush.msra.mxu0 0.0
      %1043 = vmatpush.msra.mxu0 0.0
      %1044 = vmatpush.msra.mxu0 0.0
      %1045 = vmatpush.msra.mxu0 0.0
      %1046 = vmatpush.msra.mxu0 0.0
      %1047 = vmatpush.msra.mxu0 0.0
      %1048 = vmatpush.msra.mxu0 0.0
      %1049 = vmatpush.msra.mxu0 0.0
      %1050 = vmatpush.msra.mxu0 0.0
      %1051 = vmatpush.msra.mxu0 0.0
      %1052 = vmatpush.msra.mxu0 0.0
      %1053 = vmatpush.msra.mxu0 0.0
      %1054 = vmatpush.msra.mxu0 0.0
      %1055 = vmatpush.msra.mxu0 0.0
      %1056 = vmatpush.msra.mxu0 0.0
      %v1057 = vand.u32 %v913, 4294901760
      %1058 = vmatpush.msra.mxu0 %v1057
      %v1059 = vand.u32 %v916, 4294901760
      %1060 = vmatmul.f32.gmra.mxu0 %v1059
      %v1061 = vpop.f32.mrf.mxu0
      %v1062 = vadd.f32 %v1040, %v1061
      %1063 = vdwg.mxu0
      %v1064 = vrcp.pop %v911
      %v1065 = vmul.f32 %v911, %v1064
      %v1066 = vsub.f32 1.0, %v1065
      %v1067 = vmul.f32 %v1064, %v1066
      %v1068 = vadd.f32 %v1064, %v1067
      %vm1069 = vweird.f32 %v911
      %vm1070 = vweird.f32 %v1064
      %vm1071 = vmor %vm1069, %vm1070
      %v1072 = vsel %vm1071, %v1064, %v1068
      %v1073 = vand.u32 2147483647, %v911
      %vm1074 = vcmp.eq.f32.partialorder %v1073, 8.507059e+37
      %v1075 = vand.u32 %v911, 2147483648
      %v1076 = vor.u32 1.1754944e-38, %v1075
      %v1077 = vsel %vm1074, %v1076, %v1072
      %v1078 = vmul.f32 %v1062, %v1077
      %1080 = vrot.lane.b32.xlu0 %v1078, 8
      %v1081 = vpop.permute.xlu0 %1080
      %vm1083 = vcmask 130112
      %1084 = vst.msk [vmem:[#allocation2] sm:$0xff] %vm1083, %v1081
      %1085 = vrot.lane.b32.xlu0 %v416, 112
      %v1086 = vpop.permute.xlu0 %1085
      %1087 = vrot.lane.b32.xlu0 %v416, 80
      %v1088 = vpop.permute.xlu0 %1087
      %v1089 = vsel %vm421, %v1086, 0
      %v1091 = vsel %vm421, %v1088, 0
      %1093 = vmatpush.xpose.msra.mxu0 0.0
      %1094 = vmatpush.xpose.msra.mxu0 0.0
      %1095 = vmatpush.xpose.msra.mxu0 0.0
      %1096 = vmatpush.xpose.msra.mxu0 0.0
      %1097 = vmatpush.xpose.msra.mxu0 0.0
      %1098 = vmatpush.xpose.msra.mxu0 0.0
      %1099 = vmatpush.xpose.msra.mxu0 0.0
      %1100 = vmatpush.xpose.msra.mxu0 0.0
      %1101 = vmatpush.xpose.msra.mxu0 0.0
      %1102 = vmatpush.xpose.msra.mxu0 0.0
      %1103 = vmatpush.xpose.msra.mxu0 0.0
      %1104 = vmatpush.xpose.msra.mxu0 0.0
      %1105 = vmatpush.xpose.msra.mxu0 0.0
      %1106 = vmatpush.xpose.msra.mxu0 0.0
      %1107 = vmatpush.xpose.msra.mxu0 0.0
      %v1108 = vand.u32 %v1091, 4294901760
      %1109 = vmatpush.xpose.msra.mxu0 %v1108
      %v1110 = vand.u32 %v1089, 4294901760
      %v1111 = vsub.f32 %v1089, %v1110
      %v1112 = vand.u32 %v1111, 4294901760
      %v1113 = vsub.f32 %v1111, %v1112
      %v1114 = vand.u32 %v1113, 4294901760
      %1115 = vmatmul.f32.gmra.mxu0 %v1114
      %v1116 = vpop.f32.mrf.mxu0
      %v1117 = vadd.f32 0.0, %v1116
      %1118 = vdwg.mxu0
      %1119 = vmatpush.xpose.msra.mxu0 0.0
      %1120 = vmatpush.xpose.msra.mxu0 0.0
      %1121 = vmatpush.xpose.msra.mxu0 0.0
      %1122 = vmatpush.xpose.msra.mxu0 0.0
      %1123 = vmatpush.xpose.msra.mxu0 0.0
      %1124 = vmatpush.xpose.msra.mxu0 0.0
      %1125 = vmatpush.xpose.msra.mxu0 0.0
      %1126 = vmatpush.xpose.msra.mxu0 0.0
      %1127 = vmatpush.xpose.msra.mxu0 0.0
      %1128 = vmatpush.xpose.msra.mxu0 0.0
      %1129 = vmatpush.xpose.msra.mxu0 0.0
      %1130 = vmatpush.xpose.msra.mxu0 0.0
      %1131 = vmatpush.xpose.msra.mxu0 0.0
      %1132 = vmatpush.xpose.msra.mxu0 0.0
      %1133 = vmatpush.xpose.msra.mxu0 0.0
      %v1134 = vand.u32 %v1091, 4294901760
      %v1135 = vsub.f32 %v1091, %v1134
      %v1136 = vand.u32 %v1135, 4294901760
      %v1137 = vsub.f32 %v1135, %v1136
      %v1138 = vand.u32 %v1137, 4294901760
      %1139 = vmatpush.xpose.msra.mxu0 %v1138
      %v1140 = vand.u32 %v1089, 4294901760
      %1141 = vmatmul.f32.gmra.mxu0 %v1140
      %v1142 = vpop.f32.mrf.mxu0
      %v1143 = vadd.f32 %v1117, %v1142
      %1144 = vdwg.mxu0
      %1145 = vmatpush.xpose.msra.mxu0 0.0
      %1146 = vmatpush.xpose.msra.mxu0 0.0
      %1147 = vmatpush.xpose.msra.mxu0 0.0
      %1148 = vmatpush.xpose.msra.mxu0 0.0
      %1149 = vmatpush.xpose.msra.mxu0 0.0
      %1150 = vmatpush.xpose.msra.mxu0 0.0
      %1151 = vmatpush.xpose.msra.mxu0 0.0
      %1152 = vmatpush.xpose.msra.mxu0 0.0
      %1153 = vmatpush.xpose.msra.mxu0 0.0
      %1154 = vmatpush.xpose.msra.mxu0 0.0
      %1155 = vmatpush.xpose.msra.mxu0 0.0
      %1156 = vmatpush.xpose.msra.mxu0 0.0
      %1157 = vmatpush.xpose.msra.mxu0 0.0
      %1158 = vmatpush.xpose.msra.mxu0 0.0
      %1159 = vmatpush.xpose.msra.mxu0 0.0
      %v1160 = vand.u32 %v1091, 4294901760
      %v1161 = vsub.f32 %v1091, %v1160
      %1162 = vmatpush.xpose.msra.mxu0 %v1161
      %v1163 = vand.u32 %v1089, 4294901760
      %v1164 = vsub.f32 %v1089, %v1163
      %1165 = vmatmul.f32.gmra.mxu0 %v1164
      %v1166 = vpop.f32.mrf.mxu0
      %v1167 = vadd.f32 %v1143, %v1166
      %1168 = vdwg.mxu0
      %1169 = vmatpush.xpose.msra.mxu0 0.0
      %1170 = vmatpush.xpose.msra.mxu0 0.0
      %1171 = vmatpush.xpose.msra.mxu0 0.0
      %1172 = vmatpush.xpose.msra.mxu0 0.0
      %1173 = vmatpush.xpose.msra.mxu0 0.0
      %1174 = vmatpush.xpose.msra.mxu0 0.0
      %1175 = vmatpush.xpose.msra.mxu0 0.0
      %1176 = vmatpush.xpose.msra.mxu0 0.0
      %1177 = vmatpush.xpose.msra.mxu0 0.0
      %1178 = vmatpush.xpose.msra.mxu0 0.0
      %1179 = vmatpush.xpose.msra.mxu0 0.0
      %1180 = vmatpush.xpose.msra.mxu0 0.0
      %1181 = vmatpush.xpose.msra.mxu0 0.0
      %1182 = vmatpush.xpose.msra.mxu0 0.0
      %1183 = vmatpush.xpose.msra.mxu0 0.0
      %v1184 = vand.u32 %v1091, 4294901760
      %1185 = vmatpush.xpose.msra.mxu0 %v1184
      %v1186 = vand.u32 %v1089, 4294901760
      %v1187 = vsub.f32 %v1089, %v1186
      %v1188 = vand.u32 %v1187, 4294901760
      %1189 = vmatmul.f32.gmra.mxu0 %v1188
      %v1190 = vpop.f32.mrf.mxu0
      %v1191 = vadd.f32 %v1167, %v1190
      %1192 = vdwg.mxu0
      %1193 = vmatpush.xpose.msra.mxu0 0.0
      %1194 = vmatpush.xpose.msra.mxu0 0.0
      %1195 = vmatpush.xpose.msra.mxu0 0.0
      %1196 = vmatpush.xpose.msra.mxu0 0.0
      %1197 = vmatpush.xpose.msra.mxu0 0.0
      %1198 = vmatpush.xpose.msra.mxu0 0.0
      %1199 = vmatpush.xpose.msra.mxu0 0.0
      %1200 = vmatpush.xpose.msra.mxu0 0.0
      %1201 = vmatpush.xpose.msra.mxu0 0.0
      %1202 = vmatpush.xpose.msra.mxu0 0.0
      %1203 = vmatpush.xpose.msra.mxu0 0.0
      %1204 = vmatpush.xpose.msra.mxu0 0.0
      %1205 = vmatpush.xpose.msra.mxu0 0.0
      %1206 = vmatpush.xpose.msra.mxu0 0.0
      %1207 = vmatpush.xpose.msra.mxu0 0.0
      %v1208 = vand.u32 %v1091, 4294901760
      %v1209 = vsub.f32 %v1091, %v1208
      %v1210 = vand.u32 %v1209, 4294901760
      %1211 = vmatpush.xpose.msra.mxu0 %v1210
      %v1212 = vand.u32 %v1089, 4294901760
      %1213 = vmatmul.f32.gmra.mxu0 %v1212
      %v1214 = vpop.f32.mrf.mxu0
      %v1215 = vadd.f32 %v1191, %v1214
      %1216 = vdwg.mxu0
      %1217 = vmatpush.xpose.msra.mxu0 0.0
      %1218 = vmatpush.xpose.msra.mxu0 0.0
      %1219 = vmatpush.xpose.msra.mxu0 0.0
      %1220 = vmatpush.xpose.msra.mxu0 0.0
      %1221 = vmatpush.xpose.msra.mxu0 0.0
      %1222 = vmatpush.xpose.msra.mxu0 0.0
      %1223 = vmatpush.xpose.msra.mxu0 0.0
      %1224 = vmatpush.xpose.msra.mxu0 0.0
      %1225 = vmatpush.xpose.msra.mxu0 0.0
      %1226 = vmatpush.xpose.msra.mxu0 0.0
      %1227 = vmatpush.xpose.msra.mxu0 0.0
      %1228 = vmatpush.xpose.msra.mxu0 0.0
      %1229 = vmatpush.xpose.msra.mxu0 0.0
      %1230 = vmatpush.xpose.msra.mxu0 0.0
      %1231 = vmatpush.xpose.msra.mxu0 0.0
      %v1232 = vand.u32 %v1091, 4294901760
      %1233 = vmatpush.xpose.msra.mxu0 %v1232
      %v1234 = vand.u32 %v1089, 4294901760
      %1235 = vmatmul.f32.gmra.mxu0 %v1234
      %v1236 = vpop.f32.mrf.mxu0
      %v1237 = vadd.f32 %v1215, %v1236
      %1238 = vdwg.mxu0
      %v1239 = vsel %vm421, %v1237, -inf
      %1240 = vmax.xlane.f32.xlu0 %v1239
      %v1241 = vpop.xlane.xlu0 %1240
      %v1242 = vsub.f32 %v1237, %v1241
      %v1243 = vmul.f32 %v1242, 1.442695
      %v1244 = vpow.pop %v1243
      %v1245 = vsel %vm421, %v1244, 0.0
      %1246 = vadd.xlane.f32.xlu0 %v1245
      %v1247 = vpop.xlane.xlu0 %1246
      %1248 = vrot.lane.b32.xlu0 %v416, 48
      %v1249 = vpop.permute.xlu0 %1248
      %v1252 = vsel %vm421, %v1244, 0
      %1254 = vmatpush.msra.mxu0 0.0
      %1255 = vmatpush.msra.mxu0 0.0
      %1256 = vmatpush.msra.mxu0 0.0
      %1257 = vmatpush.msra.mxu0 0.0
      %1258 = vmatpush.msra.mxu0 0.0
      %1259 = vmatpush.msra.mxu0 0.0
      %1260 = vmatpush.msra.mxu0 0.0
      %1261 = vmatpush.msra.mxu0 0.0
      %1262 = vmatpush.msra.mxu0 0.0
      %1263 = vmatpush.msra.mxu0 0.0
      %1264 = vmatpush.msra.mxu0 0.0
      %1265 = vmatpush.msra.mxu0 0.0
      %1266 = vmatpush.msra.mxu0 0.0
      %1267 = vmatpush.msra.mxu0 0.0
      %1268 = vmatpush.msra.mxu0 0.0
      %v1269 = vand.u32 %v1249, 4294901760
      %1270 = vmatpush.msra.mxu0 %v1269
      %v1271 = vand.u32 %v1252, 4294901760
      %v1272 = vsub.f32 %v1252, %v1271
      %v1273 = vand.u32 %v1272, 4294901760
      %v1274 = vsub.f32 %v1272, %v1273
      %v1275 = vand.u32 %v1274, 4294901760
      %1276 = vmatmul.f32.gmra.mxu0 %v1275
      %v1277 = vpop.f32.mrf.mxu0
      %v1278 = vadd.f32 0.0, %v1277
      %1279 = vdwg.mxu0
      %1280 = vmatpush.msra.mxu0 0.0
      %1281 = vmatpush.msra.mxu0 0.0
      %1282 = vmatpush.msra.mxu0 0.0
      %1283 = vmatpush.msra.mxu0 0.0
      %1284 = vmatpush.msra.mxu0 0.0
      %1285 = vmatpush.msra.mxu0 0.0
      %1286 = vmatpush.msra.mxu0 0.0
      %1287 = vmatpush.msra.mxu0 0.0
      %1288 = vmatpush.msra.mxu0 0.0
      %1289 = vmatpush.msra.mxu0 0.0
      %1290 = vmatpush.msra.mxu0 0.0
      %1291 = vmatpush.msra.mxu0 0.0
      %1292 = vmatpush.msra.mxu0 0.0
      %1293 = vmatpush.msra.mxu0 0.0
      %1294 = vmatpush.msra.mxu0 0.0
      %v1295 = vand.u32 %v1249, 4294901760
      %v1296 = vsub.f32 %v1249, %v1295
      %v1297 = vand.u32 %v1296, 4294901760
      %v1298 = vsub.f32 %v1296, %v1297
      %v1299 = vand.u32 %v1298, 4294901760
      %1300 = vmatpush.msra.mxu0 %v1299
      %v1301 = vand.u32 %v1252, 4294901760
      %1302 = vmatmul.f32.gmra.mxu0 %v1301
      %v1303 = vpop.f32.mrf.mxu0
      %v1304 = vadd.f32 %v1278, %v1303
      %1305 = vdwg.mxu0
      %1306 = vmatpush.msra.mxu0 0.0
      %1307 = vmatpush.msra.mxu0 0.0
      %1308 = vmatpush.msra.mxu0 0.0
      %1309 = vmatpush.msra.mxu0 0.0
      %1310 = vmatpush.msra.mxu0 0.0
      %1311 = vmatpush.msra.mxu0 0.0
      %1312 = vmatpush.msra.mxu0 0.0
      %1313 = vmatpush.msra.mxu0 0.0
      %1314 = vmatpush.msra.mxu0 0.0
      %1315 = vmatpush.msra.mxu0 0.0
      %1316 = vmatpush.msra.mxu0 0.0
      %1317 = vmatpush.msra.mxu0 0.0
      %1318 = vmatpush.msra.mxu0 0.0
      %1319 = vmatpush.msra.mxu0 0.0
      %1320 = vmatpush.msra.mxu0 0.0
      %v1321 = vand.u32 %v1249, 4294901760
      %v1322 = vsub.f32 %v1249, %v1321
      %1323 = vmatpush.msra.mxu0 %v1322
      %v1324 = vand.u32 %v1252, 4294901760
      %v1325 = vsub.f32 %v1252, %v1324
      %1326 = vmatmul.f32.gmra.mxu0 %v1325
      %v1327 = vpop.f32.mrf.mxu0
      %v1328 = vadd.f32 %v1304, %v1327
      %1329 = vdwg.mxu0
      %1330 = vmatpush.msra.mxu0 0.0
      %1331 = vmatpush.msra.mxu0 0.0
      %1332 = vmatpush.msra.mxu0 0.0
      %1333 = vmatpush.msra.mxu0 0.0
      %1334 = vmatpush.msra.mxu0 0.0
      %1335 = vmatpush.msra.mxu0 0.0
      %1336 = vmatpush.msra.mxu0 0.0
      %1337 = vmatpush.msra.mxu0 0.0
      %1338 = vmatpush.msra.mxu0 0.0
      %1339 = vmatpush.msra.mxu0 0.0
      %1340 = vmatpush.msra.mxu0 0.0
      %1341 = vmatpush.msra.mxu0 0.0
      %1342 = vmatpush.msra.mxu0 0.0
      %1343 = vmatpush.msra.mxu0 0.0
      %1344 = vmatpush.msra.mxu0 0.0
      %v1345 = vand.u32 %v1249, 4294901760
      %1346 = vmatpush.msra.mxu0 %v1345
      %v1347 = vand.u32 %v1252, 4294901760
      %v1348 = vsub.f32 %v1252, %v1347
      %v1349 = vand.u32 %v1348, 4294901760
      %1350 = vmatmul.f32.gmra.mxu0 %v1349
      %v1351 = vpop.f32.mrf.mxu0
      %v1352 = vadd.f32 %v1328, %v1351
      %1353 = vdwg.mxu0
      %1354 = vmatpush.msra.mxu0 0.0
      %1355 = vmatpush.msra.mxu0 0.0
      %1356 = vmatpush.msra.mxu0 0.0
      %1357 = vmatpush.msra.mxu0 0.0
      %1358 = vmatpush.msra.mxu0 0.0
      %1359 = vmatpush.msra.mxu0 0.0
      %1360 = vmatpush.msra.mxu0 0.0
      %1361 = vmatpush.msra.mxu0 0.0
      %1362 = vmatpush.msra.mxu0 0.0
      %1363 = vmatpush.msra.mxu0 0.0
      %1364 = vmatpush.msra.mxu0 0.0
      %1365 = vmatpush.msra.mxu0 0.0
      %1366 = vmatpush.msra.mxu0 0.0
      %1367 = vmatpush.msra.mxu0 0.0
      %1368 = vmatpush.msra.mxu0 0.0
      %v1369 = vand.u32 %v1249, 4294901760
      %v1370 = vsub.f32 %v1249, %v1369
      %v1371 = vand.u32 %v1370, 4294901760
      %1372 = vmatpush.msra.mxu0 %v1371
      %v1373 = vand.u32 %v1252, 4294901760
      %1374 = vmatmul.f32.gmra.mxu0 %v1373
      %v1375 = vpop.f32.mrf.mxu0
      %v1376 = vadd.f32 %v1352, %v1375
      %1377 = vdwg.mxu0
      %1378 = vmatpush.msra.mxu0 0.0
      %1379 = vmatpush.msra.mxu0 0.0
      %1380 = vmatpush.msra.mxu0 0.0
      %1381 = vmatpush.msra.mxu0 0.0
      %1382 = vmatpush.msra.mxu0 0.0
      %1383 = vmatpush.msra.mxu0 0.0
      %1384 = vmatpush.msra.mxu0 0.0
      %1385 = vmatpush.msra.mxu0 0.0
      %1386 = vmatpush.msra.mxu0 0.0
      %1387 = vmatpush.msra.mxu0 0.0
      %1388 = vmatpush.msra.mxu0 0.0
      %1389 = vmatpush.msra.mxu0 0.0
      %1390 = vmatpush.msra.mxu0 0.0
      %1391 = vmatpush.msra.mxu0 0.0
      %1392 = vmatpush.msra.mxu0 0.0
      %v1393 = vand.u32 %v1249, 4294901760
      %1394 = vmatpush.msra.mxu0 %v1393
      %v1395 = vand.u32 %v1252, 4294901760
      %1396 = vmatmul.f32.gmra.mxu0 %v1395
      %v1397 = vpop.f32.mrf.mxu0
      %v1398 = vadd.f32 %v1376, %v1397
      %1399 = vdwg.mxu0
      %v1400 = vrcp.pop %v1247
      %v1401 = vmul.f32 %v1247, %v1400
      %v1402 = vsub.f32 1.0, %v1401
      %v1403 = vmul.f32 %v1400, %v1402
      %v1404 = vadd.f32 %v1400, %v1403
      %vm1405 = vweird.f32 %v1247
      %vm1406 = vweird.f32 %v1400
      %vm1407 = vmor %vm1405, %vm1406
      %v1408 = vsel %vm1407, %v1400, %v1404
      %v1409 = vand.u32 2147483647, %v1247
      %vm1410 = vcmp.eq.f32.partialorder %v1409, 8.507059e+37
      %v1411 = vand.u32 %v1247, 2147483648
      %v1412 = vor.u32 1.1754944e-38, %v1411
      %v1413 = vsel %vm1410, %v1412, %v1408
      %v1414 = vmul.f32 %v1398, %v1413
      %1416 = vrot.lane.b32.xlu0 %v1414, 16
      %v1417 = vpop.permute.xlu0 %1416
      %vm1419 = vcmask 195712
      %1420 = vst.msk [vmem:[#allocation2] sm:$0xff] %vm1419, %v1417
      %1421 = vrot.lane.b32.xlu0 %v416, 104
      %v1422 = vpop.permute.xlu0 %1421
      %1423 = vrot.lane.b32.xlu0 %v416, 72
      %v1424 = vpop.permute.xlu0 %1423
      %v1425 = vsel %vm421, %v1422, 0
      %v1427 = vsel %vm421, %v1424, 0
      %1429 = vmatpush.xpose.msra.mxu0 0.0
      %1430 = vmatpush.xpose.msra.mxu0 0.0
      %1431 = vmatpush.xpose.msra.mxu0 0.0
      %1432 = vmatpush.xpose.msra.mxu0 0.0
      %1433 = vmatpush.xpose.msra.mxu0 0.0
      %1434 = vmatpush.xpose.msra.mxu0 0.0
      %1435 = vmatpush.xpose.msra.mxu0 0.0
      %1436 = vmatpush.xpose.msra.mxu0 0.0
      %1437 = vmatpush.xpose.msra.mxu0 0.0
      %1438 = vmatpush.xpose.msra.mxu0 0.0
      %1439 = vmatpush.xpose.msra.mxu0 0.0
      %1440 = vmatpush.xpose.msra.mxu0 0.0
      %1441 = vmatpush.xpose.msra.mxu0 0.0
      %1442 = vmatpush.xpose.msra.mxu0 0.0
      %1443 = vmatpush.xpose.msra.mxu0 0.0
      %v1444 = vand.u32 %v1427, 4294901760
      %1445 = vmatpush.xpose.msra.mxu0 %v1444
      %v1446 = vand.u32 %v1425, 4294901760
      %v1447 = vsub.f32 %v1425, %v1446
      %v1448 = vand.u32 %v1447, 4294901760
      %v1449 = vsub.f32 %v1447, %v1448
      %v1450 = vand.u32 %v1449, 4294901760
      %1451 = vmatmul.f32.gmra.mxu0 %v1450
      %v1452 = vpop.f32.mrf.mxu0
      %v1453 = vadd.f32 0.0, %v1452
      %1454 = vdwg.mxu0
      %1455 = vmatpush.xpose.msra.mxu0 0.0
      %1456 = vmatpush.xpose.msra.mxu0 0.0
      %1457 = vmatpush.xpose.msra.mxu0 0.0
      %1458 = vmatpush.xpose.msra.mxu0 0.0
      %1459 = vmatpush.xpose.msra.mxu0 0.0
      %1460 = vmatpush.xpose.msra.mxu0 0.0
      %1461 = vmatpush.xpose.msra.mxu0 0.0
      %1462 = vmatpush.xpose.msra.mxu0 0.0
      %1463 = vmatpush.xpose.msra.mxu0 0.0
      %1464 = vmatpush.xpose.msra.mxu0 0.0
      %1465 = vmatpush.xpose.msra.mxu0 0.0
      %1466 = vmatpush.xpose.msra.mxu0 0.0
      %1467 = vmatpush.xpose.msra.mxu0 0.0
      %1468 = vmatpush.xpose.msra.mxu0 0.0
      %1469 = vmatpush.xpose.msra.mxu0 0.0
      %v1470 = vand.u32 %v1427, 4294901760
      %v1471 = vsub.f32 %v1427, %v1470
      %v1472 = vand.u32 %v1471, 4294901760
      %v1473 = vsub.f32 %v1471, %v1472
      %v1474 = vand.u32 %v1473, 4294901760
      %1475 = vmatpush.xpose.msra.mxu0 %v1474
      %v1476 = vand.u32 %v1425, 4294901760
      %1477 = vmatmul.f32.gmra.mxu0 %v1476
      %v1478 = vpop.f32.mrf.mxu0
      %v1479 = vadd.f32 %v1453, %v1478
      %1480 = vdwg.mxu0
      %1481 = vmatpush.xpose.msra.mxu0 0.0
      %1482 = vmatpush.xpose.msra.mxu0 0.0
      %1483 = vmatpush.xpose.msra.mxu0 0.0
      %1484 = vmatpush.xpose.msra.mxu0 0.0
      %1485 = vmatpush.xpose.msra.mxu0 0.0
      %1486 = vmatpush.xpose.msra.mxu0 0.0
      %1487 = vmatpush.xpose.msra.mxu0 0.0
      %1488 = vmatpush.xpose.msra.mxu0 0.0
      %1489 = vmatpush.xpose.msra.mxu0 0.0
      %1490 = vmatpush.xpose.msra.mxu0 0.0
      %1491 = vmatpush.xpose.msra.mxu0 0.0
      %1492 = vmatpush.xpose.msra.mxu0 0.0
      %1493 = vmatpush.xpose.msra.mxu0 0.0
      %1494 = vmatpush.xpose.msra.mxu0 0.0
      %1495 = vmatpush.xpose.msra.mxu0 0.0
      %v1496 = vand.u32 %v1427, 4294901760
      %v1497 = vsub.f32 %v1427, %v1496
      %1498 = vmatpush.xpose.msra.mxu0 %v1497
      %v1499 = vand.u32 %v1425, 4294901760
      %v1500 = vsub.f32 %v1425, %v1499
      %1501 = vmatmul.f32.gmra.mxu0 %v1500
      %v1502 = vpop.f32.mrf.mxu0
      %v1503 = vadd.f32 %v1479, %v1502
      %1504 = vdwg.mxu0
      %1505 = vmatpush.xpose.msra.mxu0 0.0
      %1506 = vmatpush.xpose.msra.mxu0 0.0
      %1507 = vmatpush.xpose.msra.mxu0 0.0
      %1508 = vmatpush.xpose.msra.mxu0 0.0
      %1509 = vmatpush.xpose.msra.mxu0 0.0
      %1510 = vmatpush.xpose.msra.mxu0 0.0
      %1511 = vmatpush.xpose.msra.mxu0 0.0
      %1512 = vmatpush.xpose.msra.mxu0 0.0
      %1513 = vmatpush.xpose.msra.mxu0 0.0
      %1514 = vmatpush.xpose.msra.mxu0 0.0
      %1515 = vmatpush.xpose.msra.mxu0 0.0
      %1516 = vmatpush.xpose.msra.mxu0 0.0
      %1517 = vmatpush.xpose.msra.mxu0 0.0
      %1518 = vmatpush.xpose.msra.mxu0 0.0
      %1519 = vmatpush.xpose.msra.mxu0 0.0
      %v1520 = vand.u32 %v1427, 4294901760
      %1521 = vmatpush.xpose.msra.mxu0 %v1520
      %v1522 = vand.u32 %v1425, 4294901760
      %v1523 = vsub.f32 %v1425, %v1522
      %v1524 = vand.u32 %v1523, 4294901760
      %1525 = vmatmul.f32.gmra.mxu0 %v1524
      %v1526 = vpop.f32.mrf.mxu0
      %v1527 = vadd.f32 %v1503, %v1526
      %1528 = vdwg.mxu0
      %1529 = vmatpush.xpose.msra.mxu0 0.0
      %1530 = vmatpush.xpose.msra.mxu0 0.0
      %1531 = vmatpush.xpose.msra.mxu0 0.0
      %1532 = vmatpush.xpose.msra.mxu0 0.0
      %1533 = vmatpush.xpose.msra.mxu0 0.0
      %1534 = vmatpush.xpose.msra.mxu0 0.0
      %1535 = vmatpush.xpose.msra.mxu0 0.0
      %1536 = vmatpush.xpose.msra.mxu0 0.0
      %1537 = vmatpush.xpose.msra.mxu0 0.0
      %1538 = vmatpush.xpose.msra.mxu0 0.0
      %1539 = vmatpush.xpose.msra.mxu0 0.0
      %1540 = vmatpush.xpose.msra.mxu0 0.0
      %1541 = vmatpush.xpose.msra.mxu0 0.0
      %1542 = vmatpush.xpose.msra.mxu0 0.0
      %1543 = vmatpush.xpose.msra.mxu0 0.0
      %v1544 = vand.u32 %v1427, 4294901760
      %v1545 = vsub.f32 %v1427, %v1544
      %v1546 = vand.u32 %v1545, 4294901760
      %1547 = vmatpush.xpose.msra.mxu0 %v1546
      %v1548 = vand.u32 %v1425, 4294901760
      %1549 = vmatmul.f32.gmra.mxu0 %v1548
      %v1550 = vpop.f32.mrf.mxu0
      %v1551 = vadd.f32 %v1527, %v1550
      %1552 = vdwg.mxu0
      %1553 = vmatpush.xpose.msra.mxu0 0.0
      %1554 = vmatpush.xpose.msra.mxu0 0.0
      %1555 = vmatpush.xpose.msra.mxu0 0.0
      %1556 = vmatpush.xpose.msra.mxu0 0.0
      %1557 = vmatpush.xpose.msra.mxu0 0.0
      %1558 = vmatpush.xpose.msra.mxu0 0.0
      %1559 = vmatpush.xpose.msra.mxu0 0.0
      %1560 = vmatpush.xpose.msra.mxu0 0.0
      %1561 = vmatpush.xpose.msra.mxu0 0.0
      %1562 = vmatpush.xpose.msra.mxu0 0.0
      %1563 = vmatpush.xpose.msra.mxu0 0.0
      %1564 = vmatpush.xpose.msra.mxu0 0.0
      %1565 = vmatpush.xpose.msra.mxu0 0.0
      %1566 = vmatpush.xpose.msra.mxu0 0.0
      %1567 = vmatpush.xpose.msra.mxu0 0.0
      %v1568 = vand.u32 %v1427, 4294901760
      %1569 = vmatpush.xpose.msra.mxu0 %v1568
      %v1570 = vand.u32 %v1425, 4294901760
      %1571 = vmatmul.f32.gmra.mxu0 %v1570
      %v1572 = vpop.f32.mrf.mxu0
      %v1573 = vadd.f32 %v1551, %v1572
      %1574 = vdwg.mxu0
      %v1575 = vsel %vm421, %v1573, -inf
      %1576 = vmax.xlane.f32.xlu0 %v1575
      %v1577 = vpop.xlane.xlu0 %1576
      %v1578 = vsub.f32 %v1573, %v1577
      %v1579 = vmul.f32 %v1578, 1.442695
      %v1580 = vpow.pop %v1579
      %v1581 = vsel %vm421, %v1580, 0.0
      %1582 = vadd.xlane.f32.xlu0 %v1581
      %v1583 = vpop.xlane.xlu0 %1582
      %1584 = vrot.lane.b32.xlu0 %v416, 40
      %v1585 = vpop.permute.xlu0 %1584
      %v1588 = vsel %vm421, %v1580, 0
      %1590 = vmatpush.msra.mxu0 0.0
      %1591 = vmatpush.msra.mxu0 0.0
      %1592 = vmatpush.msra.mxu0 0.0
      %1593 = vmatpush.msra.mxu0 0.0
      %1594 = vmatpush.msra.mxu0 0.0
      %1595 = vmatpush.msra.mxu0 0.0
      %1596 = vmatpush.msra.mxu0 0.0
      %1597 = vmatpush.msra.mxu0 0.0
      %1598 = vmatpush.msra.mxu0 0.0
      %1599 = vmatpush.msra.mxu0 0.0
      %1600 = vmatpush.msra.mxu0 0.0
      %1601 = vmatpush.msra.mxu0 0.0
      %1602 = vmatpush.msra.mxu0 0.0
      %1603 = vmatpush.msra.mxu0 0.0
      %1604 = vmatpush.msra.mxu0 0.0
      %v1605 = vand.u32 %v1585, 4294901760
      %1606 = vmatpush.msra.mxu0 %v1605
      %v1607 = vand.u32 %v1588, 4294901760
      %v1608 = vsub.f32 %v1588, %v1607
      %v1609 = vand.u32 %v1608, 4294901760
      %v1610 = vsub.f32 %v1608, %v1609
      %v1611 = vand.u32 %v1610, 4294901760
      %1612 = vmatmul.f32.gmra.mxu0 %v1611
      %v1613 = vpop.f32.mrf.mxu0
      %v1614 = vadd.f32 0.0, %v1613
      %1615 = vdwg.mxu0
      %1616 = vmatpush.msra.mxu0 0.0
      %1617 = vmatpush.msra.mxu0 0.0
      %1618 = vmatpush.msra.mxu0 0.0
      %1619 = vmatpush.msra.mxu0 0.0
      %1620 = vmatpush.msra.mxu0 0.0
      %1621 = vmatpush.msra.mxu0 0.0
      %1622 = vmatpush.msra.mxu0 0.0
      %1623 = vmatpush.msra.mxu0 0.0
      %1624 = vmatpush.msra.mxu0 0.0
      %1625 = vmatpush.msra.mxu0 0.0
      %1626 = vmatpush.msra.mxu0 0.0
      %1627 = vmatpush.msra.mxu0 0.0
      %1628 = vmatpush.msra.mxu0 0.0
      %1629 = vmatpush.msra.mxu0 0.0
      %1630 = vmatpush.msra.mxu0 0.0
      %v1631 = vand.u32 %v1585, 4294901760
      %v1632 = vsub.f32 %v1585, %v1631
      %v1633 = vand.u32 %v1632, 4294901760
      %v1634 = vsub.f32 %v1632, %v1633
      %v1635 = vand.u32 %v1634, 4294901760
      %1636 = vmatpush.msra.mxu0 %v1635
      %v1637 = vand.u32 %v1588, 4294901760
      %1638 = vmatmul.f32.gmra.mxu0 %v1637
      %v1639 = vpop.f32.mrf.mxu0
      %v1640 = vadd.f32 %v1614, %v1639
      %1641 = vdwg.mxu0
      %1642 = vmatpush.msra.mxu0 0.0
      %1643 = vmatpush.msra.mxu0 0.0
      %1644 = vmatpush.msra.mxu0 0.0
      %1645 = vmatpush.msra.mxu0 0.0
      %1646 = vmatpush.msra.mxu0 0.0
      %1647 = vmatpush.msra.mxu0 0.0
      %1648 = vmatpush.msra.mxu0 0.0
      %1649 = vmatpush.msra.mxu0 0.0
      %1650 = vmatpush.msra.mxu0 0.0
      %1651 = vmatpush.msra.mxu0 0.0
      %1652 = vmatpush.msra.mxu0 0.0
      %1653 = vmatpush.msra.mxu0 0.0
      %1654 = vmatpush.msra.mxu0 0.0
      %1655 = vmatpush.msra.mxu0 0.0
      %1656 = vmatpush.msra.mxu0 0.0
      %v1657 = vand.u32 %v1585, 4294901760
      %v1658 = vsub.f32 %v1585, %v1657
      %1659 = vmatpush.msra.mxu0 %v1658
      %v1660 = vand.u32 %v1588, 4294901760
      %v1661 = vsub.f32 %v1588, %v1660
      %1662 = vmatmul.f32.gmra.mxu0 %v1661
      %v1663 = vpop.f32.mrf.mxu0
      %v1664 = vadd.f32 %v1640, %v1663
      %1665 = vdwg.mxu0
      %1666 = vmatpush.msra.mxu0 0.0
      %1667 = vmatpush.msra.mxu0 0.0
      %1668 = vmatpush.msra.mxu0 0.0
      %1669 = vmatpush.msra.mxu0 0.0
      %1670 = vmatpush.msra.mxu0 0.0
      %1671 = vmatpush.msra.mxu0 0.0
      %1672 = vmatpush.msra.mxu0 0.0
      %1673 = vmatpush.msra.mxu0 0.0
      %1674 = vmatpush.msra.mxu0 0.0
      %1675 = vmatpush.msra.mxu0 0.0
      %1676 = vmatpush.msra.mxu0 0.0
      %1677 = vmatpush.msra.mxu0 0.0
      %1678 = vmatpush.msra.mxu0 0.0
      %1679 = vmatpush.msra.mxu0 0.0
      %1680 = vmatpush.msra.mxu0 0.0
      %v1681 = vand.u32 %v1585, 4294901760
      %1682 = vmatpush.msra.mxu0 %v1681
      %v1683 = vand.u32 %v1588, 4294901760
      %v1684 = vsub.f32 %v1588, %v1683
      %v1685 = vand.u32 %v1684, 4294901760
      %1686 = vmatmul.f32.gmra.mxu0 %v1685
      %v1687 = vpop.f32.mrf.mxu0
      %v1688 = vadd.f32 %v1664, %v1687
      %1689 = vdwg.mxu0
      %1690 = vmatpush.msra.mxu0 0.0
      %1691 = vmatpush.msra.mxu0 0.0
      %1692 = vmatpush.msra.mxu0 0.0
      %1693 = vmatpush.msra.mxu0 0.0
      %1694 = vmatpush.msra.mxu0 0.0
      %1695 = vmatpush.msra.mxu0 0.0
      %1696 = vmatpush.msra.mxu0 0.0
      %1697 = vmatpush.msra.mxu0 0.0
      %1698 = vmatpush.msra.mxu0 0.0
      %1699 = vmatpush.msra.mxu0 0.0
      %1700 = vmatpush.msra.mxu0 0.0
      %1701 = vmatpush.msra.mxu0 0.0
      %1702 = vmatpush.msra.mxu0 0.0
      %1703 = vmatpush.msra.mxu0 0.0
      %1704 = vmatpush.msra.mxu0 0.0
      %v1705 = vand.u32 %v1585, 4294901760
      %v1706 = vsub.f32 %v1585, %v1705
      %v1707 = vand.u32 %v1706, 4294901760
      %1708 = vmatpush.msra.mxu0 %v1707
      %v1709 = vand.u32 %v1588, 4294901760
      %1710 = vmatmul.f32.gmra.mxu0 %v1709
      %v1711 = vpop.f32.mrf.mxu0
      %v1712 = vadd.f32 %v1688, %v1711
      %1713 = vdwg.mxu0
      %1714 = vmatpush.msra.mxu0 0.0
      %1715 = vmatpush.msra.mxu0 0.0
      %1716 = vmatpush.msra.mxu0 0.0
      %1717 = vmatpush.msra.mxu0 0.0
      %1718 = vmatpush.msra.mxu0 0.0
      %1719 = vmatpush.msra.mxu0 0.0
      %1720 = vmatpush.msra.mxu0 0.0
      %1721 = vmatpush.msra.mxu0 0.0
      %1722 = vmatpush.msra.mxu0 0.0
      %1723 = vmatpush.msra.mxu0 0.0
      %1724 = vmatpush.msra.mxu0 0.0
      %1725 = vmatpush.msra.mxu0 0.0
      %1726 = vmatpush.msra.mxu0 0.0
      %1727 = vmatpush.msra.mxu0 0.0
      %1728 = vmatpush.msra.mxu0 0.0
      %v1729 = vand.u32 %v1585, 4294901760
      %1730 = vmatpush.msra.mxu0 %v1729
      %v1731 = vand.u32 %v1588, 4294901760
      %1732 = vmatmul.f32.gmra.mxu0 %v1731
      %v1733 = vpop.f32.mrf.mxu0
      %v1734 = vadd.f32 %v1712, %v1733
      %1735 = vdwg.mxu0
      %v1736 = vrcp.pop %v1583
      %v1737 = vmul.f32 %v1583, %v1736
      %v1738 = vsub.f32 1.0, %v1737
      %v1739 = vmul.f32 %v1736, %v1738
      %v1740 = vadd.f32 %v1736, %v1739
      %vm1741 = vweird.f32 %v1583
      %vm1742 = vweird.f32 %v1736
      %vm1743 = vmor %vm1741, %vm1742
      %v1744 = vsel %vm1743, %v1736, %v1740
      %v1745 = vand.u32 2147483647, %v1583
      %vm1746 = vcmp.eq.f32.partialorder %v1745, 8.507059e+37
      %v1747 = vand.u32 %v1583, 2147483648
      %v1748 = vor.u32 1.1754944e-38, %v1747
      %v1749 = vsel %vm1746, %v1748, %v1744
      %v1750 = vmul.f32 %v1734, %v1749
      %1752 = vrot.lane.b32.xlu0 %v1750, 24
      %v1753 = vpop.permute.xlu0 %1752
      %vm1755 = vcmask 261312
      %1756 = vst.msk [vmem:[#allocation2] sm:$0xff] %vm1755, %v1753
      %v1757 = vld [vmem:[#allocation2] sm:$0xff]
      %v1758 = vld [vmem:[%s3] sm:$0xff]
      %v1759 = vld [vmem:[%s3 + $0x8] sm:$0xff]
      %v1760 = vld [vmem:[%s3 + $0x10] sm:$0xff]
      %v1761 = vld [vmem:[%s3 + $0x18] sm:$0xff]
      %v1762 = vld [vmem:[%s4] sm:$0x1]
      %v1764 = vperm.slane %v1762, 0
      %v1767 = vsel %vm229, %v1757, 0
      %1769 = vmatpush.msra.mxu0 0.0
      %1770 = vmatpush.msra.mxu0 0.0
      %1771 = vmatpush.msra.mxu0 0.0
      %1772 = vmatpush.msra.mxu0 0.0
      %1773 = vmatpush.msra.mxu0 0.0
      %1774 = vmatpush.msra.mxu0 0.0
      %1775 = vmatpush.msra.mxu0 0.0
      %1776 = vmatpush.msra.mxu0 0.0
      %1777 = vmatpush.msra.mxu0 0.0
      %1778 = vmatpush.msra.mxu0 0.0
      %1779 = vmatpush.msra.mxu0 0.0
      %1780 = vmatpush.msra.mxu0 0.0
      %v1781 = vand.u32 %v1761, 4294901760
      %1782 = vmatpush.msra.mxu0 %v1781
      %v1783 = vand.u32 %v1760, 4294901760
      %1784 = vmatpush.msra.mxu0 %v1783
      %v1785 = vand.u32 %v1759, 4294901760
      %1786 = vmatpush.msra.mxu0 %v1785
      %v1787 = vand.u32 %v1758, 4294901760
      %1788 = vmatpush.msra.mxu0 %v1787
      %v1789 = vand.u32 %v1767, 4294901760
      %v1790 = vsub.f32 %v1767, %v1789
      %v1791 = vand.u32 %v1790, 4294901760
      %v1792 = vsub.f32 %v1790, %v1791
      %v1793 = vand.u32 %v1792, 4294901760
      %1794 = vmatmul.f32.gmra.mxu0 %v1793
      %v1795 = vpop.f32.mrf.mxu0
      %v1796 = vadd.f32 %v1764, %v1795
      %1797 = vdwg.mxu0
      %1798 = vmatpush.msra.mxu0 0.0
      %1799 = vmatpush.msra.mxu0 0.0
      %1800 = vmatpush.msra.mxu0 0.0
      %1801 = vmatpush.msra.mxu0 0.0
      %1802 = vmatpush.msra.mxu0 0.0
      %1803 = vmatpush.msra.mxu0 0.0
      %1804 = vmatpush.msra.mxu0 0.0
      %1805 = vmatpush.msra.mxu0 0.0
      %1806 = vmatpush.msra.mxu0 0.0
      %1807 = vmatpush.msra.mxu0 0.0
      %1808 = vmatpush.msra.mxu0 0.0
      %1809 = vmatpush.msra.mxu0 0.0
      %v1810 = vand.u32 %v1761, 4294901760
      %v1811 = vsub.f32 %v1761, %v1810
      %v1812 = vand.u32 %v1811, 4294901760
      %v1813 = vsub.f32 %v1811, %v1812
      %v1814 = vand.u32 %v1813, 4294901760
      %1815 = vmatpush.msra.mxu0 %v1814
      %v1816 = vand.u32 %v1760, 4294901760
      %v1817 = vsub.f32 %v1760, %v1816
      %v1818 = vand.u32 %v1817, 4294901760
      %v1819 = vsub.f32 %v1817, %v1818
      %v1820 = vand.u32 %v1819, 4294901760
      %1821 = vmatpush.msra.mxu0 %v1820
      %v1822 = vand.u32 %v1759, 4294901760
      %v1823 = vsub.f32 %v1759, %v1822
      %v1824 = vand.u32 %v1823, 4294901760
      %v1825 = vsub.f32 %v1823, %v1824
      %v1826 = vand.u32 %v1825, 4294901760
      %1827 = vmatpush.msra.mxu0 %v1826
      %v1828 = vand.u32 %v1758, 4294901760
      %v1829 = vsub.f32 %v1758, %v1828
      %v1830 = vand.u32 %v1829, 4294901760
      %v1831 = vsub.f32 %v1829, %v1830
      %v1832 = vand.u32 %v1831, 4294901760
      %1833 = vmatpush.msra.mxu0 %v1832
      %v1834 = vand.u32 %v1767, 4294901760
      %1835 = vmatmul.f32.gmra.mxu0 %v1834
      %v1836 = vpop.f32.mrf.mxu0
      %v1837 = vadd.f32 %v1796, %v1836
      %1838 = vdwg.mxu0
      %1839 = vmatpush.msra.mxu0 0.0
      %1840 = vmatpush.msra.mxu0 0.0
      %1841 = vmatpush.msra.mxu0 0.0
      %1842 = vmatpush.msra.mxu0 0.0
      %1843 = vmatpush.msra.mxu0 0.0
      %1844 = vmatpush.msra.mxu0 0.0
      %1845 = vmatpush.msra.mxu0 0.0
      %1846 = vmatpush.msra.mxu0 0.0
      %1847 = vmatpush.msra.mxu0 0.0
      %1848 = vmatpush.msra.mxu0 0.0
      %1849 = vmatpush.msra.mxu0 0.0
      %1850 = vmatpush.msra.mxu0 0.0
      %v1851 = vand.u32 %v1761, 4294901760
      %v1852 = vsub.f32 %v1761, %v1851
      %1853 = vmatpush.msra.mxu0 %v1852
      %v1854 = vand.u32 %v1760, 4294901760
      %v1855 = vsub.f32 %v1760, %v1854
      %1856 = vmatpush.msra.mxu0 %v1855
      %v1857 = vand.u32 %v1759, 4294901760
      %v1858 = vsub.f32 %v1759, %v1857
      %1859 = vmatpush.msra.mxu0 %v1858
      %v1860 = vand.u32 %v1758, 4294901760
      %v1861 = vsub.f32 %v1758, %v1860
      %1862 = vmatpush.msra.mxu0 %v1861
      %v1863 = vand.u32 %v1767, 4294901760
      %v1864 = vsub.f32 %v1767, %v1863
      %1865 = vmatmul.f32.gmra.mxu0 %v1864
      %v1866 = vpop.f32.mrf.mxu0
      %v1867 = vadd.f32 %v1837, %v1866
      %1868 = vdwg.mxu0
      %1869 = vmatpush.msra.mxu0 0.0
      %1870 = vmatpush.msra.mxu0 0.0
      %1871 = vmatpush.msra.mxu0 0.0
      %1872 = vmatpush.msra.mxu0 0.0
      %1873 = vmatpush.msra.mxu0 0.0
      %1874 = vmatpush.msra.mxu0 0.0
      %1875 = vmatpush.msra.mxu0 0.0
      %1876 = vmatpush.msra.mxu0 0.0
      %1877 = vmatpush.msra.mxu0 0.0
      %1878 = vmatpush.msra.mxu0 0.0
      %1879 = vmatpush.msra.mxu0 0.0
      %1880 = vmatpush.msra.mxu0 0.0
      %v1881 = vand.u32 %v1761, 4294901760
      %1882 = vmatpush.msra.mxu0 %v1881
      %v1883 = vand.u32 %v1760, 4294901760
      %1884 = vmatpush.msra.mxu0 %v1883
      %v1885 = vand.u32 %v1759, 4294901760
      %1886 = vmatpush.msra.mxu0 %v1885
      %v1887 = vand.u32 %v1758, 4294901760
      %1888 = vmatpush.msra.mxu0 %v1887
      %v1889 = vand.u32 %v1767, 4294901760
      %v1890 = vsub.f32 %v1767, %v1889
      %v1891 = vand.u32 %v1890, 4294901760
      %1892 = vmatmul.f32.gmra.mxu0 %v1891
      %v1893 = vpop.f32.mrf.mxu0
      %v1894 = vadd.f32 %v1867, %v1893
      %1895 = vdwg.mxu0
      %1896 = vmatpush.msra.mxu0 0.0
      %1897 = vmatpush.msra.mxu0 0.0
      %1898 = vmatpush.msra.mxu0 0.0
      %1899 = vmatpush.msra.mxu0 0.0
      %1900 = vmatpush.msra.mxu0 0.0
      %1901 = vmatpush.msra.mxu0 0.0
      %1902 = vmatpush.msra.mxu0 0.0
      %1903 = vmatpush.msra.mxu0 0.0
      %1904 = vmatpush.msra.mxu0 0.0
      %1905 = vmatpush.msra.mxu0 0.0
      %1906 = vmatpush.msra.mxu0 0.0
      %1907 = vmatpush.msra.mxu0 0.0
      %v1908 = vand.u32 %v1761, 4294901760
      %v1909 = vsub.f32 %v1761, %v1908
      %v1910 = vand.u32 %v1909, 4294901760
      %1911 = vmatpush.msra.mxu0 %v1910
      %v1912 = vand.u32 %v1760, 4294901760
      %v1913 = vsub.f32 %v1760, %v1912
      %v1914 = vand.u32 %v1913, 4294901760
      %1915 = vmatpush.msra.mxu0 %v1914
      %v1916 = vand.u32 %v1759, 4294901760
      %v1917 = vsub.f32 %v1759, %v1916
      %v1918 = vand.u32 %v1917, 4294901760
      %1919 = vmatpush.msra.mxu0 %v1918
      %v1920 = vand.u32 %v1758, 4294901760
      %v1921 = vsub.f32 %v1758, %v1920
      %v1922 = vand.u32 %v1921, 4294901760
      %1923 = vmatpush.msra.mxu0 %v1922
      %v1924 = vand.u32 %v1767, 4294901760
      %1925 = vmatmul.f32.gmra.mxu0 %v1924
      %v1926 = vpop.f32.mrf.mxu0
      %v1927 = vadd.f32 %v1894, %v1926
      %1928 = vdwg.mxu0
      %1929 = vmatpush.msra.mxu0 0.0
      %1930 = vmatpush.msra.mxu0 0.0
      %1931 = vmatpush.msra.mxu0 0.0
      %1932 = vmatpush.msra.mxu0 0.0
      %1933 = vmatpush.msra.mxu0 0.0
      %1934 = vmatpush.msra.mxu0 0.0
      %1935 = vmatpush.msra.mxu0 0.0
      %1936 = vmatpush.msra.mxu0 0.0
      %1937 = vmatpush.msra.mxu0 0.0
      %1938 = vmatpush.msra.mxu0 0.0
      %1939 = vmatpush.msra.mxu0 0.0
      %1940 = vmatpush.msra.mxu0 0.0
      %v1941 = vand.u32 %v1761, 4294901760
      %1942 = vmatpush.msra.mxu0 %v1941
      %v1943 = vand.u32 %v1760, 4294901760
      %1944 = vmatpush.msra.mxu0 %v1943
      %v1945 = vand.u32 %v1759, 4294901760
      %1946 = vmatpush.msra.mxu0 %v1945
      %v1947 = vand.u32 %v1758, 4294901760
      %1948 = vmatpush.msra.mxu0 %v1947
      %v1949 = vand.u32 %v1767, 4294901760
      %1950 = vmatmul.f32.gmra.mxu0 %v1949
      %v1951 = vpop.f32.mrf.mxu0
      %v1952 = vadd.f32 %v1927, %v1951
      %1953 = vdwg.mxu0
      %1954 = vst.msk [vmem:[%s219] sm:$0xff] %vm229, %v1952
      %p1955 = scmp.lt.s32.totalorder %s16, 1
      %s1956 = scalar_select %p1955, %s16, 1
      %s1957 = smul.addr %s1956, 8
      %s1958 = scalar_lea.vmem %s5, %s1957
      // Predicated region
      $region41: #{mha_forward.1} parent=39 // pred_check
        %p1959 = pneg %p144
      $region42: #{mha_forward.1} parent=39 // pred_check_branch
        %1961 = sbr.rel (%p1959) target = $region44
      $region43: #{mha_forward.1} parent=39 // pred_region
        _
      $region44: #{mha_forward.1} parent=39 // pred_fallthru
        _
    $region40: #{mha_forward.1} parent=5 // pred_fallthru
      _
    %p1962 = scmp.le.s32.totalorder 2, %s11
    // Predicated region
    $region45: #{mha_forward.1} parent=5 // pred_check
      %p1963 = pneg %p1962
    $region46: #{mha_forward.1} parent=5 // pred_check_branch
      %1965 = sbr.rel (%p1963) target = $region48
    $region47: #{mha_forward.1} parent=5 // pred_region
      %s1966 = ssub.s32 %s11, 2
      // Predicated region
      $region49: #{mha_forward.1} parent=47 // pred_check
        %p1967 = pneg %p150
      $region50: #{mha_forward.1} parent=47 // pred_check_branch
        %1969 = sbr.rel (%p1967) target = $region52
      $region51: #{mha_forward.1} parent=47 // pred_region
        %p1970 = scmp.lt.s32.totalorder %s17, 1
        %s1971 = scalar_select %p1970, %s17, 1
        %s1972 = smul.addr %s1971, 8
        %s1973 = scalar_lea.vmem %s5, %s1972
      $region52: #{mha_forward.1} parent=47 // pred_fallthru
        _
    $region48: #{mha_forward.1} parent=5 // pred_fallthru
      _
  $region6: #{mha_forward.1} parent=0 // loop_footer
    %s15 = sadd.s32 1, %s11
  $region7: #{mha_forward.1} parent=0 // loop_footer_branch
    %10 = sbr.rel target = $region3
  $region8: #{mha_forward.1} parent=0 // loop_exit
    _

</llo_original>
